<compile_context>
chip_gen: v6e
topology: v6e:2x2x1
jax: 0.10.0
libtpu: 0.0.40
codegen_flags: <defaults>
</compile_context>

<pallas_src>
import functools
import numpy as np
import jax
import jax.numpy as jnp
from jax.experimental import pallas as pl
from jax.experimental.pallas import tpu as pltpu

# ----------------------- small synthetic config ------------------------------
N_FREQ = 16          # n_mels / n_freq    (original: 80)
N_T = 32             # unit frames        (original: 608)
PATCH = 16           # patch size
SR = 16000
N_FFT = 400
HOP = 160            # 0.01 * sr
WIN = 400            # 0.025 * sr
EMBED_DIM = 32       # original: 768
DEPTH = 2            # original: 12
N_HEADS = 2
MLP_RATIO = 4
LMS_MEAN = -7.056
LMS_STD = 4.193
LN_EPS = 1e-6
LOG_OFFSET = float(np.finfo(np.float32).eps)   # torch.finfo().eps

NUM_PATCHES = (N_FREQ // PATCH) * (N_T // PATCH)
PATCH_FBINS = N_FREQ // PATCH

K_BINS = N_FFT // 2 + 1                       # 201 rfft bins
KP = ((K_BINS + 127) // 128) * 128            # lane-padded to 256

VMEM = functools.partial(pl.BlockSpec, memory_space=pltpu.MemorySpace.VMEM)

# Safe on all of v5e/v6e/v7x at these shapes; re-derive for real-scale tiles.
_CPARAMS = pltpu.CompilerParams(
    dimension_semantics=("parallel",),
    vmem_limit_bytes=32 * 1024 * 1024,
)


# ----------------------------- front-end constants ----------------------------
def _hz_to_mel(f):
    return 2595.0 * np.log10(1.0 + f / 700.0)


def _mel_to_hz(m):
    return 700.0 * (10.0 ** (m / 2595.0) - 1.0)


def _make_mel_fb(n_freqs, n_mels, f_min, f_max, sr):
    all_freqs = np.linspace(0.0, sr / 2.0, n_freqs)
    m_pts = np.linspace(_hz_to_mel(f_min), _hz_to_mel(f_max), n_mels + 2)
    f_pts = _mel_to_hz(m_pts)
    f_diff = f_pts[1:] - f_pts[:-1]
    slopes = f_pts[None, :] - all_freqs[:, None]
    down = -slopes[:, :-2] / f_diff[:-1]
    up = slopes[:, 2:] / f_diff[1:]
    fb = np.maximum(0.0, np.minimum(down, up))
    return fb.astype(np.float32)                          # (n_freqs, n_mels)


def _make_fused_dft():
    """Hann-folded fused [cos | -sin] DFT weight, row-indexed by (j*HOP + m)."""
    n = np.arange(N_FFT)
    hann = (0.5 - 0.5 * np.cos(2.0 * np.pi * n / WIN)).astype(np.float32)
    ang = 2.0 * np.pi * np.outer(n, np.arange(K_BINS)) / N_FFT
    cos_m = (np.cos(ang) * hann[:, None]).astype(np.float32)     # (n_fft, K)
    sin_m = (-np.sin(ang) * hann[:, None]).astype(np.float32)
    w = np.zeros((3 * HOP, 2 * KP), np.float32)
    w[:N_FFT, :K_BINS] = cos_m
    w[:N_FFT, KP:KP + K_BINS] = sin_m
    return w


_DFT_W = _make_fused_dft()                                       # (480, 512)
_MEL_PAD = np.zeros((KP, N_FREQ), np.float32)
_MEL_PAD[:K_BINS] = _make_mel_fb(K_BINS, N_FREQ, 50.0, SR // 2, SR)


# ----------------------------- Pallas kernels --------------------------------
def _logmel_kernel(waveh_ref, dft_ref, mel_ref, out_ref):
    """One batch row: hop-framed waveform (n_hops, HOP) -> log-mel (n_mels, T).

    frames @ [cos|-sin] with overlapping WIN=400 / HOP=160 windows is decomposed
    into sum_j  waveh[j : j+T] @ dft[j*HOP:(j+1)*HOP]  (j = 0..2), so no
    overlap-expanded frame matrix is ever materialised in HBM.
    """
    T = out_ref.shape[2]
    wh = waveh_ref[0]                                            # (n_hops, HOP)
    dft = dft_ref[...]                                           # (3*HOP, 2*KP)

    acc = jnp.zeros((T, 2 * KP), jnp.float32)
    for j in range(3):                                           # static, 3 iters
        acc = acc + jnp.dot(wh[j:j + T, :], dft[j * HOP:(j + 1) * HOP, :],
                            preferred_element_type=jnp.float32)

    re = acc[:, :KP]                                             # 256-aligned slices
    im = acc[:, KP:]
    power = re * re + im * im                                    # (T, KP)
    mel = jnp.dot(power, mel_ref[...], preferred_element_type=jnp.float32)
    lm = (jnp.log(mel + LOG_OFFSET) - LMS_MEAN) * (1.0 / LMS_STD)
    out_ref[0] = lm.T                                            # (n_mels, T), frames on lanes


def _patch_embed_kernel(p_ref, w_ref, b_ref, pos_ref, cls_ref, out_ref):
    """patches (1,N,Pd) @ w (Pd,D) + b + pos, cls-token prepended -> (1, N+1, D)."""
    tok = jnp.dot(p_ref[0].astype(jnp.bfloat16), w_ref[...],
                  preferred_element_type=jnp.float32)
    tok = tok + b_ref[...] + pos_ref[0]                          # (N, D)
    out_ref[0] = jnp.concatenate([cls_ref[0], tok], axis=0)      # (N+1, D)


def _block_kernel(x_ref, ln1w_ref, ln1b_ref, wq_ref, bq_ref, wk_ref, bk_ref,
                  wv_ref, bv_ref, wo_ref, bo_ref, ln2w_ref, ln2b_ref,
                  w1_ref, b1_ref, w2_ref, b2_ref, out_ref):
    """Pre-norm ViT block for one batch element:  x + MHA(LN1(x)) ; x + MLP(LN2(x))."""
    _, S, D = x_ref.shape
    H, _, hd = wq_ref.shape
    scale = 1.0 / (hd ** 0.5)

    x = x_ref[0]                                                 # (S, D) f32

    # ---- LayerNorm 1 (f32) ----
    mu = jnp.mean(x, axis=-1, keepdims=True)
    var = jnp.mean((x - mu) ** 2, axis=-1, keepdims=True)
    h = (x - mu) * jax.lax.rsqrt(var + LN_EPS) * ln1w_ref[...] + ln1b_ref[...]

    # ---- multi-head attention: all heads batched, no per-head lane slicing ----
    hb = jnp.broadcast_to(h.astype(jnp.bfloat16)[None], (H, S, D))      # (H,S,D)
    q = jnp.einsum('hsd,hde->hse', hb, wq_ref[...],
                   preferred_element_type=jnp.float32) + bq_ref[...]    # (H,S,hd)
    k = jnp.einsum('hsd,hde->hse', hb, wk_ref[...],
                   preferred_element_type=jnp.float32) + bk_ref[...]
    v = jnp.einsum('hsd,hde->hse', hb, wv_ref[...],
                   preferred_element_type=jnp.float32) + bv_ref[...]

    s = jnp.einsum('hse,hte->hst', q.astype(jnp.bfloat16), k.astype(jnp.bfloat16),
                   preferred_element_type=jnp.float32) * scale          # (H,S,S)
    s = s - jnp.max(s, axis=-1, keepdims=True)
    p = jnp.exp(s)
    p = p * pl.reciprocal(jnp.sum(p, axis=-1, keepdims=True), approx=True)

    o = jnp.einsum('hst,hte->hse', p.astype(jnp.bfloat16), v.astype(jnp.bfloat16),
                   preferred_element_type=jnp.float32)                  # (H,S,hd)
    attn = jnp.einsum('hse,hed->hsd', o.astype(jnp.bfloat16), wo_ref[...],
                      preferred_element_type=jnp.float32)               # (H,S,D)
    attn = jnp.sum(attn, axis=0) + bo_ref[...]                          # (S,D)
    x1 = x + attn

    # ---- LayerNorm 2 + MLP ----
    mu2 = jnp.mean(x1, axis=-1, keepdims=True)
    var2 = jnp.mean((x1 - mu2) ** 2, axis=-1, keepdims=True)
    h2 = (x1 - mu2) * jax.lax.rsqrt(var2 + LN_EPS) * ln2w_ref[...] + ln2b_ref[...]
    z = jnp.dot(h2.astype(jnp.bfloat16), w1_ref[...],
                preferred_element_type=jnp.float32) + b1_ref[...]
    # TODO(synk): PyTorch nn.GELU default is exact erf; tanh approximation used here.
    z = 0.5 * z * (1.0 + jnp.tanh(0.7978845608028654 * (z + 0.044715 * z * z * z)))
    z = jnp.dot(z.astype(jnp.bfloat16), w2_ref[...],
                preferred_element_type=jnp.float32) + b2_ref[...]

    out_ref[0] = x1 + z


def _mean_time_kernel(x_ref, out_ref):
    """x (B, L, T, d) -> mean over axis 2 -> (B, L, d)."""
    out_ref[...] = jnp.mean(x_ref[...], axis=2)


# ------------------------------ Pallas wrappers -------------------------------
def pallas_logmel(wave):
    """waveform (B, n_samples) -> normalized log-mel (B, n_mels, n_frames)."""
    B, n_samples = wave.shape
    n_frames = (n_samples - N_FFT) // HOP + 1
    n_hops = n_frames + 2                      # shifted views j=0..2 need T+2 rows
    total = n_hops * HOP
    if total >= n_samples:
        wave = jnp.pad(wave, ((0, 0), (0, total - n_samples)))
    else:
        wave = wave[:, :total]                 # trailing samples unused by any frame
    waveh = wave.reshape(B, n_hops, HOP)       # free reshape, no overlap expansion

    dft = jnp.asarray(_DFT_W)
    melp = jnp.asarray(_MEL_PAD)
    return pl.pallas_call(
        _logmel_kernel,
        out_shape=jax.ShapeDtypeStruct((B, N_FREQ, n_frames), jnp.float32),
        grid=(B,),
        in_specs=[
            pl.BlockSpec((1, n_hops, HOP), lambda b: (b, 0, 0)),
            pl.BlockSpec(dft.shape, lambda b: (0, 0)),     # resident DFT weight
            pl.BlockSpec(melp.shape, lambda b: (0, 0)),    # resident mel fb
        ],
        out_specs=pl.BlockSpec((1, N_FREQ, n_frames), lambda b: (b, 0, 0)),
        compiler_params=_CPARAMS,
    )(waveh, dft, melp)


def pallas_patch_embed_tokens(patches, w, b, pos_patches, cls_tok):
    """(B, N, Pd) patches -> (B, N+1, D) tokens with pos-embed + cls fused in."""
    B, N, Pd = patches.shape
    D = w.shape[1]
    return pl.pallas_call(
        _patch_embed_kernel,
        out_shape=jax.ShapeDtypeStruct((B, N + 1, D), jnp.float32),
        grid=(B,),
        in_specs=[
            pl.BlockSpec((1, N, Pd), lambda b: (b, 0, 0)),
            pl.BlockSpec((Pd, D), lambda b: (0, 0)),
            pl.BlockSpec((1, D), lambda b: (0, 0)),
            pl.BlockSpec((1, N, D), lambda b: (0, 0, 0)),
            pl.BlockSpec((1, 1, D), lambda b: (0, 0, 0)),
        ],
        out_specs=pl.BlockSpec((1, N + 1, D), lambda b: (b, 0, 0)),
        compiler_params=_CPARAMS,
    )(patches, w, b, pos_patches, cls_tok)


def pallas_block(x, block_params):
    B, S, D = x.shape
    in_specs = [pl.BlockSpec((1, S, D), lambda b: (b, 0, 0))]
    for w in block_params:                     # weights resident across the batch grid
        in_specs.append(pl.BlockSpec(w.shape, lambda b, n=w.ndim: (0,) * n))
    return pl.pallas_call(
        _block_kernel,
        out_shape=jax.ShapeDtypeStruct((B, S, D), jnp.float32),
        grid=(B,),
        in_specs=in_specs,
        out_specs=pl.BlockSpec((1, S, D), lambda b: (b, 0, 0)),
        compiler_params=_CPARAMS,
    )(x, *block_params)


def pallas_mean_time(x4d):
    B, L, T, d = x4d.shape
    return pl.pallas_call(
        _mean_time_kernel,
        out_shape=jax.ShapeDtypeStruct((B, L, d), jnp.float32),
        in_specs=[VMEM()],
        out_specs=VMEM(),
    )(x4d)


# ------------------------------- model pieces ---------------------------------
def log_mel_preprocess(wave):
    if wave.ndim < 2:
        wave = wave[None]
    return pallas_logmel(wave.astype(jnp.float32))       # (B, n_mels, n_frames)


def extract_features(spec_chunk, params):
    """spec_chunk (B, F, T) -> (last_layer (B, S, D), layer_results (B, L, S, D))."""
    B, F, T = spec_chunk.shape
    Fp, Tp = F // PATCH, T // PATCH
    p = spec_chunk.reshape(B, Fp, PATCH, Tp, PATCH)
    p = p.transpose(0, 1, 3, 2, 4).reshape(B, Fp * Tp, PATCH * PATCH)

    pos = params["pos_embed"]                             # (1, N_full+1, D)
    pos_patches = pos[:, 1:, :]
    N = Fp * Tp
    if N < pos_patches.shape[1]:
        frames = N // PATCH_FBINS
        pos_patches = pos_patches.reshape(1, PATCH_FBINS, -1, EMBED_DIM)
        pos_patches = pos_patches[:, :, :frames, :].reshape(
            1, PATCH_FBINS * frames, EMBED_DIM)
    cls_tok = params["cls_token"] + pos[:, :1, :]         # (1, 1, D)

    x = pallas_patch_embed_tokens(p, params["pe_w"], params["pe_b"],
                                  pos_patches, cls_tok)   # (B, N+1, D)

    layer_out = []
    for blk in params["blocks"]:
        x = pallas_block(x, blk)
        layer_out.append(x)
    layer_results = jnp.stack(layer_out, axis=1)          # (B, L, N+1, D)
    return layer_results[:, -1], layer_results


def forward_precise(spec, params):
    """spec (B, F, T_total) -> (emb (B, t, fbins*D), layer_results (B, L, t, fbins*D))."""
    T = spec.shape[-1]
    n_chunk = (T + N_T - 1) // N_T
    pad = (PATCH - T % PATCH) % PATCH
    if pad > 0:
        spec = jnp.pad(spec, ((0, 0), (0, 0), (0, pad)))
    embeddings = []
    for i in range(n_chunk):
        chunk = spec[..., i * N_T:(i + 1) * N_T]
        _, layer_results = extract_features(chunk, params)
        lr = layer_results[..., 1:, :]                    # drop cls
        B, L, N, D = lr.shape
        t = N // PATCH_FBINS
        lr = lr.reshape(B, L, PATCH_FBINS, t, D).transpose(0, 1, 3, 2, 4)
        lr = lr.reshape(B, L, t, PATCH_FBINS * D)
        embeddings.append(lr)
    layer_results = jnp.concatenate(embeddings, axis=-2)
    emb = layer_results[:, -1]
    return emb, layer_results


def matpac_forward(wave, params, pull_time_dimension=True):
    spec = log_mel_preprocess(wave)                       # (B, F, T)
    emb, layer_results = forward_precise(spec, params)
    if pull_time_dimension:
        layer_results = pallas_mean_time(layer_results)   # mean over time
        emb = layer_results[:, -1]                        # == mean over time of emb
    return emb, layer_results


# ------------------------------ parameter init --------------------------------
def init_params(key):
    ks = jax.random.split(key, 4 + DEPTH)
    D = EMBED_DIM
    hd = D // N_HEADS
    pe_w = jax.random.normal(ks[0], (D, 1, PATCH, PATCH), jnp.float32) * 0.02
    params = {
        "pe_w": pe_w.reshape(D, PATCH * PATCH).T.astype(jnp.bfloat16),  # (patch_dim, D)
        "pe_b": jnp.zeros((1, D), jnp.float32),
        "cls_token": jax.random.normal(ks[1], (1, 1, D), jnp.float32) * 0.02,
        "pos_embed": jax.random.normal(ks[2], (1, NUM_PATCHES + 1, D), jnp.float32) * 0.02,
        "blocks": [],
    }
    hidden = D * MLP_RATIO
    for li in range(DEPTH):
        bk = jax.random.split(ks[4 + li], 4)
        wqkv = jax.random.normal(bk[0], (D, 3 * D), jnp.float32) * 0.02
        wproj = jax.random.normal(bk[1], (D, D), jnp.float32) * 0.02
        w1 = jax.random.normal(bk[2], (D, hidden), jnp.float32) * 0.02
        w2 = jax.random.normal(bk[3], (hidden, D), jnp.float32) * 0.02
        # per-head repacking (same math as fused Wqkv / Wproj, no in-kernel slicing)
        wq = wqkv[:, 0 * D:1 * D].reshape(D, N_HEADS, hd).transpose(1, 0, 2)  # (H,D,hd)
        wk = wqkv[:, 1 * D:2 * D].reshape(D, N_HEADS, hd).transpose(1, 0, 2)
        wv = wqkv[:, 2 * D:3 * D].reshape(D, N_HEADS, hd).transpose(1, 0, 2)
        wo = wproj.reshape(N_HEADS, hd, D)                                    # (H,hd,D)
        zero_h = jnp.zeros((N_HEADS, 1, hd), jnp.float32)
        blk = (
            jnp.ones((1, D), jnp.float32), jnp.zeros((1, D), jnp.float32),    # ln1 w,b
            wq.astype(jnp.bfloat16), zero_h,                                  # Wq, bq
            wk.astype(jnp.bfloat16), zero_h,                                  # Wk, bk
            wv.astype(jnp.bfloat16), zero_h,                                  # Wv, bv
            wo.astype(jnp.bfloat16), jnp.zeros((1, D), jnp.float32),          # Wo, bo
            jnp.ones((1, D), jnp.float32), jnp.zeros((1, D), jnp.float32),    # ln2 w,b
            w1.astype(jnp.bfloat16), jnp.zeros((1, hidden), jnp.float32),     # W1, b1
            w2.astype(jnp.bfloat16), jnp.zeros((1, D), jnp.float32),          # W2, b2
        )
        params["blocks"].append(blk)
    return params


# ----------------------------------- main --------------------------------------
if __name__ == "__main__":
    bs = 2
    n_samples = N_FFT + (N_T - 1) * HOP                    # 5360 -> exactly N_T frames
    key = jax.random.PRNGKey(0)
    k_wave, k_params = jax.random.split(key)
    wave = jax.random.normal(k_wave, (bs, n_samples), dtype=jnp.float32)

    params = init_params(k_params)
    emb, layer_results = matpac_forward(wave, params, pull_time_dimension=True)
    emb, layer_results = jax.block_until_ready((emb, layer_results))

    assert emb.shape == (bs, PATCH_FBINS * EMBED_DIM), emb.shape
    assert layer_results.shape == (bs, DEPTH, PATCH_FBINS * EMBED_DIM), layer_results.shape
    assert bool(jnp.all(jnp.isfinite(emb))) and bool(jnp.all(jnp.isfinite(layer_results)))
    print("KERNEL_OK")
</pallas_src>

<mosaic_0001>
module attributes {stable_mosaic.version = 11 : i64} {
  func.func @_logmel_kernel(%arg0: i32, %arg1: memref<1x34x160xf32, #tpu.memory_space<vmem>>, %arg2: memref<480x512xf32, #tpu.memory_space<vmem>>, %arg3: memref<256x16xf32, #tpu.memory_space<vmem>>, %arg4: memref<1x16x32xf32, #tpu.memory_space<vmem>>) attributes {dimension_semantics = [#tpu.dimension_semantics<parallel>], iteration_bounds = array<i64: 2>, scalar_prefetch = 0 : i64, scratch_operands = 0 : i64, tpu.core_type = #tpu.core_type<tc>, window_params = [{transform_indices = @transform_0, window_bounds = array<i64: 1, 34, 160>}, {pipeline_mode = #tpu.pipeline_mode<synchronous>, transform_indices = @transform_1, window_bounds = array<i64: 480, 512>}, {pipeline_mode = #tpu.pipeline_mode<synchronous>, transform_indices = @transform_2, window_bounds = array<i64: 256, 16>}, {transform_indices = @transform_3, window_bounds = array<i64: 1, 16, 32>}]} {
    %c0 = arith.constant 0 : index
    %c0_0 = arith.constant 0 : index
    %c0_1 = arith.constant 0 : index
    %0 = vector.load %arg1[%c0, %c0_0, %c0_1] : memref<1x34x160xf32, #tpu.memory_space<vmem>>, vector<1x34x160xf32>
    %1 = vector.shape_cast %0 : vector<1x34x160xf32> to vector<34x160xf32>
    %c0_2 = arith.constant 0 : index
    %c0_3 = arith.constant 0 : index
    %2 = vector.load %arg2[%c0_2, %c0_3] : memref<480x512xf32, #tpu.memory_space<vmem>>, vector<480x512xf32>
    %cst = arith.constant 0.000000e+00 : f32
    %3 = vector.broadcast %cst : f32 to vector<32x512xf32>
    %4 = vector.extract_strided_slice %1 {offsets = [0, 0], sizes = [32, 160], strides = [1, 1]} : vector<34x160xf32> to vector<32x160xf32>
    %5 = vector.extract_strided_slice %2 {offsets = [0, 0], sizes = [160, 512], strides = [1, 1]} : vector<480x512xf32> to vector<160x512xf32>
    %cst_4 = arith.constant dense<0.000000e+00> : vector<32x512xf32>
    %6 = tpu.matmul %4, %5, %cst_4 {dimension_numbers = #tpu.dot_dimension_numbers<[1], [0], [0], [1], [0, 0, 1, 1], [], []>} : vector<32x160xf32>, vector<160x512xf32>, vector<32x512xf32> -> vector<32x512xf32>
    %7 = arith.addf %3, %6 : vector<32x512xf32>
    %8 = vector.extract_strided_slice %1 {offsets = [1, 0], sizes = [32, 160], strides = [1, 1]} : vector<34x160xf32> to vector<32x160xf32>
    %9 = vector.extract_strided_slice %2 {offsets = [160, 0], sizes = [160, 512], strides = [1, 1]} : vector<480x512xf32> to vector<160x512xf32>
    %cst_5 = arith.constant dense<0.000000e+00> : vector<32x512xf32>
    %10 = tpu.matmul %8, %9, %cst_5 {dimension_numbers = #tpu.dot_dimension_numbers<[1], [0], [0], [1], [0, 0, 1, 1], [], []>} : vector<32x160xf32>, vector<160x512xf32>, vector<32x512xf32> -> vector<32x512xf32>
    %11 = arith.addf %7, %10 : vector<32x512xf32>
    %12 = vector.extract_strided_slice %1 {offsets = [2, 0], sizes = [32, 160], strides = [1, 1]} : vector<34x160xf32> to vector<32x160xf32>
    %13 = vector.extract_strided_slice %2 {offsets = [320, 0], sizes = [160, 512], strides = [1, 1]} : vector<480x512xf32> to vector<160x512xf32>
    %cst_6 = arith.constant dense<0.000000e+00> : vector<32x512xf32>
    %14 = tpu.matmul %12, %13, %cst_6 {dimension_numbers = #tpu.dot_dimension_numbers<[1], [0], [0], [1], [0, 0, 1, 1], [], []>} : vector<32x160xf32>, vector<160x512xf32>, vector<32x512xf32> -> vector<32x512xf32>
    %15 = arith.addf %11, %14 : vector<32x512xf32>
    %16 = vector.extract_strided_slice %15 {offsets = [0, 0], sizes = [32, 256], strides = [1, 1]} : vector<32x512xf32> to vector<32x256xf32>
    %17 = vector.extract_strided_slice %15 {offsets = [0, 256], sizes = [32, 256], strides = [1, 1]} : vector<32x512xf32> to vector<32x256xf32>
    %18 = arith.mulf %16, %16 : vector<32x256xf32>
    %19 = arith.mulf %17, %17 : vector<32x256xf32>
    %20 = arith.addf %18, %19 : vector<32x256xf32>
    %c0_7 = arith.constant 0 : index
    %c0_8 = arith.constant 0 : index
    %21 = vector.load %arg3[%c0_7, %c0_8] : memref<256x16xf32, #tpu.memory_space<vmem>>, vector<256x16xf32>
    %cst_9 = arith.constant dense<0.000000e+00> : vector<32x16xf32>
    %22 = tpu.matmul %20, %21, %cst_9 {dimension_numbers = #tpu.dot_dimension_numbers<[1], [0], [0], [1], [0, 0, 1, 1], [], []>} : vector<32x256xf32>, vector<256x16xf32>, vector<32x16xf32> -> vector<32x16xf32>
    %cst_10 = arith.constant 1.1920929E-7 : f32
    %23 = vector.broadcast %cst_10 : f32 to vector<32x16xf32>
    %24 = arith.addf %22, %23 : vector<32x16xf32>
    %25 = math.log %24 : vector<32x16xf32>
    %cst_11 = arith.constant -7.056000e+00 : f32
    %26 = vector.broadcast %cst_11 : f32 to vector<32x16xf32>
    %27 = arith.subf %25, %26 : vector<32x16xf32>
    %cst_12 = arith.constant 0.238492727 : f32
    %28 = vector.broadcast %cst_12 : f32 to vector<32x16xf32>
    %29 = arith.mulf %27, %28 : vector<32x16xf32>
    %30 = tpu.transpose %29, [1, 0] : vector<32x16xf32> -> vector<16x32xf32>
    %c0_13 = arith.constant 0 : index
    %c0_14 = arith.constant 0 : index
    %c0_15 = arith.constant 0 : index
    %31 = vector.load %arg4[%c0_13, %c0_14, %c0_15] : memref<1x16x32xf32, #tpu.memory_space<vmem>>, vector<1x16x32xf32>
    %32 = vector.shape_cast %31 : vector<1x16x32xf32> to vector<16x32xf32>
    %33 = vector.shape_cast %30 : vector<16x32xf32> to vector<1x16x32xf32>
    tpu.vector_store %arg4[%c0_13, %c0_14, %c0_15], %33 {strides = array<i32>} : memref<1x16x32xf32, #tpu.memory_space<vmem>>, vector<1x16x32xf32>,
    return
  }
  func.func @transform_0(%arg0: i32) -> (i32, i32, i32) {
    %c0_i32 = arith.constant 0 : i32
    %c0_i32_0 = arith.constant 0 : i32
    %c0_i32_1 = arith.constant 0 : i32
    return %arg0, %c0_i32, %c0_i32_0 : i32, i32, i32
  }
  func.func @transform_1(%arg0: i32) -> (i32, i32) {
    %c0_i32 = arith.constant 0 : i32
    %c0_i32_0 = arith.constant 0 : i32
    %c0_i32_1 = arith.constant 0 : i32
    return %c0_i32, %c0_i32_0 : i32, i32
  }
  func.func @transform_2(%arg0: i32) -> (i32, i32) {
    %c0_i32 = arith.constant 0 : i32
    %c0_i32_0 = arith.constant 0 : i32
    %c0_i32_1 = arith.constant 0 : i32
    return %c0_i32, %c0_i32_0 : i32, i32
  }
  func.func @transform_3(%arg0: i32) -> (i32, i32, i32) {
    %c0_i32 = arith.constant 0 : i32
    %c0_i32_0 = arith.constant 0 : i32
    %c0_i32_1 = arith.constant 0 : i32
    return %arg0, %c0_i32, %c0_i32_0 : i32, i32, i32
  }
}

</mosaic_0001>

<llo_original>
// kernel: tpu_custom_call.1
$region0: #{tpu_custom_call.1}
  #allocation0 [shape = 'u32[]', space=smem, size = 0x4, offset = 0x4, fixed_abs, tag = 'smem constant byte address 0x4 - core index']
  #allocation1 [shape = 'u32[144,128]{1,0:T(1,128)}', space=vmem, size = 0x12000, scoped, tag = 'internal scratch']
  %s0 = inlined_call_operand.vmem [shape: f32[2,34,160], index: 0, kind: input, shape index: {}]
  %s1 = inlined_call_operand.hbm [shape: f32[480,512], index: 1, kind: input, shape index: {}]
  %s2 = inlined_call_operand.vmem [shape: f32[256,16], index: 2, kind: input, shape index: {}]
  %s3 = inlined_call_operand.hbm [shape: f32[2,16,32], index: 3, kind: output, shape index: {}]
  %s4 = sld [smem:[#allocation0]]
  $region49: #{tpu_custom_call.1} parent=0
    _
  %s6 = ssub.s32 1, %s4
  %s7 = scalar_select 0, %s6, %s4
  $region1: #{tpu_custom_call.1} parent=0
    #allocation2 [shape = 'u8[983040]{0}', space=vmem, size = 0xf0000, scoped, tag = 'input window, operand 1, single buffered']
    #allocation3 [shape = 's32[2]{0}', space=sflag, size = 0x8, scoped, tag = 'scoped memory for tpu_custom_call.1']
    #allocation4 [shape = 's32[2]{0}', space=sflag, size = 0x8, scoped, tag = 'scoped memory for tpu_custom_call.1']
    #allocation5 [shape = 'u8[16384]{0}', space=vmem, size = 0x4000, scoped, tag = 'output window, operand 0']
    %8 = vsyncpa [#allocation3], 0
    %9 = vsyncpa [#allocation4], 0
    %s10 = scalar_lea.sflag [#allocation4], 1
    %11 = vsyncpa %s10, 0
    loop: start=0, step=1, limit=4
    $region2: #{tpu_custom_call.1} parent=1 // loop_pre_header
      _
    $region3: #{tpu_custom_call.1} parent=1 // loop_header
      %s13 = sphi 0, %s17
      %p14 = scmp.ge.s32.totalorder %s13, 4
      %s23 = sphi 0, %s25
      %s26 = sphi 0, %s23
      %s27 = sphi 0, %s26
      %s43 = sphi 0, %s27
      %s47 = sphi 0, %s47
      %s49 = sphi 0, %s47
      %s50 = sphi 0, %s49
      %s64 = sphi 0, %s50
      %s68 = sphi 0, %s68
      %s70 = sphi 0, %s68
      %s71 = sphi 0, %s70
      %s85 = sphi 0, %s71
      %s91 = sphi 0, %s93
      %s94 = sphi 0, %s91
      %s95 = sphi 0, %s94
      %s111 = sphi 0, %s95
    $region4: #{tpu_custom_call.1} parent=1 // loop_header_branch
      %16 = sbr.rel (%p14) target = $region8
    $region5: #{tpu_custom_call.1} parent=1 // loop_body
      %s18 = ssub.s32 %s13, 1
      %s19 = ssub.s32 %s13, 2
      %s20 = sadd.s32 %s13, 1
      %s21 = ssub.s32 %s13, %s20
      %p22 = scmp.eq.s32.totalorder %s21, 0
      %s24 = sadd.s32 %s23, 1
      %s25 = scalar_select %p22, %s23, %s24
      %p28 = pneg %p22
      %p29 = scmp.eq.s32.totalorder %s13, 1
      %p30 = por %p28, %p29
      %p31 = scmp.ne.s32.totalorder %s23, %s26
      %p32 = scmp.eq.s32.totalorder %s13, 0
      %p33 = por %p31, %p32
      %p34 = scmp.ne.s32.totalorder %s23, %s26
      %p35 = scmp.eq.s32.totalorder %s18, 1
      %p36 = por %p34, %p35
      %p37 = scmp.ne.s32.totalorder %s26, %s27
      %p38 = scmp.eq.s32.totalorder %s18, 0
      %p39 = por %p37, %p38
      %p40 = scmp.ne.s32.totalorder %s26, %s27
      %p41 = scmp.eq.s32.totalorder %s19, 1
      %p42 = por %p40, %p41
      %p44 = scmp.ne.s32.totalorder %s27, %s43
      %p45 = scmp.eq.s32.totalorder %s19, 0
      %p46 = por %p44, %p45
      %s48 = sadd.s32 %s47, 1
      %p51 = scmp.eq.s32.totalorder %s13, 1
      %p52 = scmp.ne.s32.totalorder %s47, %s49
      %p53 = scmp.eq.s32.totalorder %s13, 0
      %p54 = por %p52, %p53
      %p55 = scmp.ne.s32.totalorder %s47, %s49
      %p56 = scmp.eq.s32.totalorder %s18, 1
      %p57 = por %p55, %p56
      %p58 = scmp.ne.s32.totalorder %s49, %s50
      %p59 = scmp.eq.s32.totalorder %s18, 0
      %p60 = por %p58, %p59
      %p61 = scmp.ne.s32.totalorder %s49, %s50
      %p62 = scmp.eq.s32.totalorder %s19, 1
      %p63 = por %p61, %p62
      %p65 = scmp.ne.s32.totalorder %s50, %s64
      %p66 = scmp.eq.s32.totalorder %s19, 0
      %p67 = por %p65, %p66
      %s69 = sadd.s32 %s68, 1
      %p72 = scmp.eq.s32.totalorder %s13, 1
      %p73 = scmp.ne.s32.totalorder %s68, %s70
      %p74 = scmp.eq.s32.totalorder %s13, 0
      %p75 = por %p73, %p74
      %p76 = scmp.ne.s32.totalorder %s68, %s70
      %p77 = scmp.eq.s32.totalorder %s18, 1
      %p78 = por %p76, %p77
      %p79 = scmp.ne.s32.totalorder %s70, %s71
      %p80 = scmp.eq.s32.totalorder %s18, 0
      %p81 = por %p79, %p80
      %p82 = scmp.ne.s32.totalorder %s70, %s71
      %p83 = scmp.eq.s32.totalorder %s19, 1
      %p84 = por %p82, %p83
      %p86 = scmp.ne.s32.totalorder %s71, %s85
      %p87 = scmp.eq.s32.totalorder %s19, 0
      %p88 = por %p86, %p87
      %s89 = ssub.s32 %s13, %s20
      %p90 = scmp.eq.s32.totalorder %s89, 0
      %s92 = sadd.s32 %s91, 1
      %s93 = scalar_select %p90, %s91, %s92
      %p96 = pneg %p90
      %p97 = scmp.eq.s32.totalorder %s13, 1
      %p98 = por %p96, %p97
      %p99 = scmp.ne.s32.totalorder %s91, %s94
      %p100 = scmp.eq.s32.totalorder %s13, 0
      %p101 = por %p99, %p100
      %p102 = scmp.ne.s32.totalorder %s91, %s94
      %p103 = scmp.eq.s32.totalorder %s18, 1
      %p104 = por %p102, %p103
      %p105 = scmp.ne.s32.totalorder %s94, %s95
      %p106 = scmp.eq.s32.totalorder %s18, 0
      %p107 = por %p105, %p106
      %p108 = scmp.ne.s32.totalorder %s94, %s95
      %p109 = scmp.eq.s32.totalorder %s19, 1
      %p110 = por %p108, %p109
      %p112 = scmp.ne.s32.totalorder %s95, %s111
      %p113 = scmp.eq.s32.totalorder %s19, 0
      %p114 = por %p112, %p113
      %p115 = scmp.le.s32.totalorder 1, %s13
      %p116 = scmp.lt.s32.totalorder %s13, 3
      %p117 = pnand %p115, %p116
      %p118 = pneg %p117
      // Predicated region
      $region9: #{tpu_custom_call.1} parent=5 // pred_check
        _
      $region10: #{tpu_custom_call.1} parent=5 // pred_check_branch
        %120 = sbr.rel (%p117) target = $region12
      $region11: #{tpu_custom_call.1} parent=5 // pred_region
        %s121 = ssub.s32 %s13, 1
        // Predicated region
        $region13: #{tpu_custom_call.1} parent=11 // pred_check
          %p122 = pneg %p60
        $region14: #{tpu_custom_call.1} parent=11 // pred_check_branch
          %124 = sbr.rel (%p122) target = $region16
        $region15: #{tpu_custom_call.1} parent=11 // pred_region
          %s126 = ssub.s32 30720, 30720
          %127 = vsyncadd [#allocation3], %s126
          %s128 = sshll.u32 [#allocation2], 4
          %s129 = int_to_ptr.vmem [resolvable:$true] %s128
          %134 = dma.hbm_to_vmem [thread:$0]  %s1, 30720, %s129, [#allocation3], 512, 512, 32
        $region16: #{tpu_custom_call.1} parent=11 // pred_fallthru
          _
        // Predicated region
        $region17: #{tpu_custom_call.1} parent=11 // pred_check
          %p135 = pneg %p81
        $region18: #{tpu_custom_call.1} parent=11 // pred_check_branch
          %137 = sbr.rel (%p135) target = $region20
        $region19: #{tpu_custom_call.1} parent=11 // pred_region
          _
        $region20: #{tpu_custom_call.1} parent=11 // pred_fallthru
          _
      $region12: #{tpu_custom_call.1} parent=5 // pred_fallthru
        _
      %p138 = scmp.lt.s32.totalorder %s13, 2
      // Predicated region
      $region21: #{tpu_custom_call.1} parent=5 // pred_check
        %p139 = pneg %p138
      $region22: #{tpu_custom_call.1} parent=5 // pred_check_branch
        %141 = sbr.rel (%p139) target = $region24
      $region23: #{tpu_custom_call.1} parent=5 // pred_region
        // Predicated region
        $region25: #{tpu_custom_call.1} parent=23 // pred_check
          %p142 = pneg %p33
        $region26: #{tpu_custom_call.1} parent=23 // pred_check_branch
          %144 = sbr.rel (%p142) target = $region28
        $region27: #{tpu_custom_call.1} parent=23 // pred_region
          %p145 = scmp.lt.s32.totalorder %s13, 1
          %s146 = scalar_select %p145, %s13, 1
          %s147 = smul.addr %s146, 10
          %s148 = smul.addr %s147, 8
          %s149 = scalar_lea.vmem %s0, %s148
        $region28: #{tpu_custom_call.1} parent=23 // pred_fallthru
          _
      $region24: #{tpu_custom_call.1} parent=5 // pred_fallthru
        _
      %p150 = scmp.le.s32.totalorder 1, %s13
      %p151 = scmp.lt.s32.totalorder %s13, 3
      %p152 = pnand %p150, %p151
      %p153 = pneg %p152
      // Predicated region
      $region29: #{tpu_custom_call.1} parent=5 // pred_check
        _
      $region30: #{tpu_custom_call.1} parent=5 // pred_check_branch
        %155 = sbr.rel (%p152) target = $region32
      $region31: #{tpu_custom_call.1} parent=5 // pred_region
        %s156 = ssub.s32 %s13, 1
        // Predicated region
        $region33: #{tpu_custom_call.1} parent=31 // pred_check
          %p157 = pneg %p60
        $region34: #{tpu_custom_call.1} parent=31 // pred_check_branch
          %159 = sbr.rel (%p157) target = $region36
        $region35: #{tpu_custom_call.1} parent=31 // pred_region
          %160 = dma.done [#allocation3], 30720
        $region36: #{tpu_custom_call.1} parent=31 // pred_fallthru
          _
        %p161 = scmp.lt.s32.totalorder %s18, 1
        %s162 = scalar_select %p161, %s18, 1
        %s163 = smul.addr %s162, 10
        %s164 = smul.addr %s163, 8
        %s165 = scalar_lea.vmem %s0, %s164
        %p166 = pneg %p39
        %p167 = pneg %p36
        %p168 = pneg %p60
        %p169 = pneg %p57
        %p170 = pneg %p81
        %p171 = pneg %p78
        %p172 = pneg %p107
        %p173 = pneg %p104
        %s174 = sand.u32 %s94, 1
        %s175 = scalar_lea.sflag [#allocation4], %s174
        %s176 = sand.u32 %s94, 1
        %s177 = smul.addr %s176, 16
        %s178 = scalar_lea.vmem [#allocation5], %s177
        %p179 = scmp.lt.s32.totalorder %s18, 1
        %s180 = scalar_select %p179, %s18, 1
        %s181 = smul.addr %s180, 10
        %s182 = smul.addr %s181, 8
        %s183 = scalar_lea.vmem %s0, %s182
        %v184 = vld [vmem:[%s183] sm:$0xff]
        %v185 = vld [vmem:[%s183 + $0x8] sm:$0xff]
        %v186 = vld [vmem:[%s183 + $0x10] sm:$0xff]
        %v187 = vld [vmem:[%s183 + $0x18] sm:$0xff]
        %v188 = vld [vmem:[%s183 + $0x20] sm:$0xff]
        %v189 = vld [vmem:[%s183 + $0x28] sm:$0xff]
        %v190 = vld [vmem:[%s183 + $0x30] sm:$0xff]
        %v191 = vld [vmem:[%s183 + $0x38] sm:$0xff]
        %v192 = vld [vmem:[%s183 + $0x40] sm:$0x3]
        %v193 = vld [vmem:[%s183 + $0x48] sm:$0x3]
        %v194 = vld [vmem:[#allocation2] sm:$0xff]
        %v195 = vld [vmem:[#allocation2 + $0x8] sm:$0xff]
        %v196 = vld [vmem:[#allocation2 + $0x10] sm:$0xff]
        %v197 = vld [vmem:[#allocation2 + $0x18] sm:$0xff]
        %v198 = vld [vmem:[#allocation2 + $0x20] sm:$0xff]
        %v199 = vld [vmem:[#allocation2 + $0x28] sm:$0xff]
        %v200 = vld [vmem:[#allocation2 + $0x30] sm:$0xff]
        %v201 = vld [vmem:[#allocation2 + $0x38] sm:$0xff]
        %v202 = vld [vmem:[#allocation2 + $0x40] sm:$0xff]
        %v203 = vld [vmem:[#allocation2 + $0x48] sm:$0xff]
        %v204 = vld [vmem:[#allocation2 + $0x50] sm:$0xff]
        %v205 = vld [vmem:[#allocation2 + $0x58] sm:$0xff]
        %v206 = vld [vmem:[#allocation2 + $0x60] sm:$0xff]
        %v207 = vld [vmem:[#allocation2 + $0x68] sm:$0xff]
        %v208 = vld [vmem:[#allocation2 + $0x70] sm:$0xff]
        %v209 = vld [vmem:[#allocation2 + $0x78] sm:$0xff]
        %v210 = vld [vmem:[#allocation2 + $0x80] sm:$0xff]
        %v211 = vld [vmem:[#allocation2 + $0x88] sm:$0xff]
        %v212 = vld [vmem:[#allocation2 + $0x90] sm:$0xff]
        %v213 = vld [vmem:[#allocation2 + $0x98] sm:$0xff]
        %v214 = vld [vmem:[#allocation2 + $0xa0] sm:$0xff]
        %v215 = vld [vmem:[#allocation2 + $0xa8] sm:$0xff]
        %v216 = vld [vmem:[#allocation2 + $0xb0] sm:$0xff]
        %v217 = vld [vmem:[#allocation2 + $0xb8] sm:$0xff]
        %v218 = vld [vmem:[#allocation2 + $0xc0] sm:$0xff]
        %v219 = vld [vmem:[#allocation2 + $0xc8] sm:$0xff]
        %v220 = vld [vmem:[#allocation2 + $0xd0] sm:$0xff]
        %v221 = vld [vmem:[#allocation2 + $0xd8] sm:$0xff]
        %v222 = vld [vmem:[#allocation2 + $0xe0] sm:$0xff]
        %v223 = vld [vmem:[#allocation2 + $0xe8] sm:$0xff]
        %v224 = vld [vmem:[#allocation2 + $0xf0] sm:$0xff]
        %v225 = vld [vmem:[#allocation2 + $0xf8] sm:$0xff]
        %v226 = vld [vmem:[#allocation2 + $0x100] sm:$0xff]
        %v227 = vld [vmem:[#allocation2 + $0x108] sm:$0xff]
        %v228 = vld [vmem:[#allocation2 + $0x110] sm:$0xff]
        %v229 = vld [vmem:[#allocation2 + $0x118] sm:$0xff]
        %v230 = vld [vmem:[#allocation2 + $0x120] sm:$0xff]
        %v231 = vld [vmem:[#allocation2 + $0x128] sm:$0xff]
        %v232 = vld [vmem:[#allocation2 + $0x130] sm:$0xff]
        %v233 = vld [vmem:[#allocation2 + $0x138] sm:$0xff]
        %v234 = vld [vmem:[#allocation2 + $0x140] sm:$0xff]
        %v235 = vld [vmem:[#allocation2 + $0x148] sm:$0xff]
        %v236 = vld [vmem:[#allocation2 + $0x150] sm:$0xff]
        %v237 = vld [vmem:[#allocation2 + $0x158] sm:$0xff]
        %v238 = vld [vmem:[#allocation2 + $0x160] sm:$0xff]
        %v239 = vld [vmem:[#allocation2 + $0x168] sm:$0xff]
        %v240 = vld [vmem:[#allocation2 + $0x170] sm:$0xff]
        %v241 = vld [vmem:[#allocation2 + $0x178] sm:$0xff]
        %v242 = vld [vmem:[#allocation2 + $0x180] sm:$0xff]
        %v243 = vld [vmem:[#allocation2 + $0x188] sm:$0xff]
        %v244 = vld [vmem:[#allocation2 + $0x190] sm:$0xff]
        %v245 = vld [vmem:[#allocation2 + $0x198] sm:$0xff]
        %v246 = vld [vmem:[#allocation2 + $0x1a0] sm:$0xff]
        %v247 = vld [vmem:[#allocation2 + $0x1a8] sm:$0xff]
        %v248 = vld [vmem:[#allocation2 + $0x1b0] sm:$0xff]
        %v249 = vld [vmem:[#allocation2 + $0x1b8] sm:$0xff]
        %v250 = vld [vmem:[#allocation2 + $0x1c0] sm:$0xff]
        %v251 = vld [vmem:[#allocation2 + $0x1c8] sm:$0xff]
        %v252 = vld [vmem:[#allocation2 + $0x1d0] sm:$0xff]
        %v253 = vld [vmem:[#allocation2 + $0x1d8] sm:$0xff]
        %v254 = vld [vmem:[#allocation2 + $0x1e0] sm:$0xff]
        %v255 = vld [vmem:[#allocation2 + $0x1e8] sm:$0xff]
        %v256 = vld [vmem:[#allocation2 + $0x1f0] sm:$0xff]
        %v257 = vld [vmem:[#allocation2 + $0x1f8] sm:$0xff]
        %v258 = vld [vmem:[#allocation2 + $0x200] sm:$0xff]
        %v259 = vld [vmem:[#allocation2 + $0x208] sm:$0xff]
        %v260 = vld [vmem:[#allocation2 + $0x210] sm:$0xff]
        %v261 = vld [vmem:[#allocation2 + $0x218] sm:$0xff]
        %v262 = vld [vmem:[#allocation2 + $0x220] sm:$0xff]
        %v263 = vld [vmem:[#allocation2 + $0x228] sm:$0xff]
        %v264 = vld [vmem:[#allocation2 + $0x230] sm:$0xff]
        %v265 = vld [vmem:[#allocation2 + $0x238] sm:$0xff]
        %v266 = vld [vmem:[#allocation2 + $0x240] sm:$0xff]
        %v267 = vld [vmem:[#allocation2 + $0x248] sm:$0xff]
        %v268 = vld [vmem:[#allocation2 + $0x250] sm:$0xff]
        %v269 = vld [vmem:[#allocation2 + $0x258] sm:$0xff]
        %v270 = vld [vmem:[#allocation2 + $0x260] sm:$0xff]
        %v271 = vld [vmem:[#allocation2 + $0x268] sm:$0xff]
        %v272 = vld [vmem:[#allocation2 + $0x270] sm:$0xff]
        %v273 = vld [vmem:[#allocation2 + $0x278] sm:$0xff]
        %v274 = vld [vmem:[#allocation2 + $0x280] sm:$0xff]
        %v275 = vld [vmem:[#allocation2 + $0x288] sm:$0xff]
        %v276 = vld [vmem:[#allocation2 + $0x290] sm:$0xff]
        %v277 = vld [vmem:[#allocation2 + $0x298] sm:$0xff]
        %v278 = vld [vmem:[#allocation2 + $0x2a0] sm:$0xff]
        %v279 = vld [vmem:[#allocation2 + $0x2a8] sm:$0xff]
        %v280 = vld [vmem:[#allocation2 + $0x2b0] sm:$0xff]
        %v281 = vld [vmem:[#allocation2 + $0x2b8] sm:$0xff]
        %v282 = vld [vmem:[#allocation2 + $0x2c0] sm:$0xff]
        %v283 = vld [vmem:[#allocation2 + $0x2c8] sm:$0xff]
        %v284 = vld [vmem:[#allocation2 + $0x2d0] sm:$0xff]
        %v285 = vld [vmem:[#allocation2 + $0x2d8] sm:$0xff]
        %v286 = vld [vmem:[#allocation2 + $0x2e0] sm:$0xff]
        %v287 = vld [vmem:[#allocation2 + $0x2e8] sm:$0xff]
        %v288 = vld [vmem:[#allocation2 + $0x2f0] sm:$0xff]
        %v289 = vld [vmem:[#allocation2 + $0x2f8] sm:$0xff]
        %v290 = vld [vmem:[#allocation2 + $0x300] sm:$0xff]
        %v291 = vld [vmem:[#allocation2 + $0x308] sm:$0xff]
        %v292 = vld [vmem:[#allocation2 + $0x310] sm:$0xff]
        %v293 = vld [vmem:[#allocation2 + $0x318] sm:$0xff]
        %v294 = vld [vmem:[#allocation2 + $0x320] sm:$0xff]
        %v295 = vld [vmem:[#allocation2 + $0x328] sm:$0xff]
        %v296 = vld [vmem:[#allocation2 + $0x330] sm:$0xff]
        %v297 = vld [vmem:[#allocation2 + $0x338] sm:$0xff]
        %v298 = vld [vmem:[#allocation2 + $0x340] sm:$0xff]
        %v299 = vld [vmem:[#allocation2 + $0x348] sm:$0xff]
        %v300 = vld [vmem:[#allocation2 + $0x350] sm:$0xff]
        %v301 = vld [vmem:[#allocation2 + $0x358] sm:$0xff]
        %v302 = vld [vmem:[#allocation2 + $0x360] sm:$0xff]
        %v303 = vld [vmem:[#allocation2 + $0x368] sm:$0xff]
        %v304 = vld [vmem:[#allocation2 + $0x370] sm:$0xff]
        %v305 = vld [vmem:[#allocation2 + $0x378] sm:$0xff]
        %v306 = vld [vmem:[#allocation2 + $0x380] sm:$0xff]
        %v307 = vld [vmem:[#allocation2 + $0x388] sm:$0xff]
        %v308 = vld [vmem:[#allocation2 + $0x390] sm:$0xff]
        %v309 = vld [vmem:[#allocation2 + $0x398] sm:$0xff]
        %v310 = vld [vmem:[#allocation2 + $0x3a0] sm:$0xff]
        %v311 = vld [vmem:[#allocation2 + $0x3a8] sm:$0xff]
        %v312 = vld [vmem:[#allocation2 + $0x3b0] sm:$0xff]
        %v313 = vld [vmem:[#allocation2 + $0x3b8] sm:$0xff]
        %v314 = vld [vmem:[#allocation2 + $0x3c0] sm:$0xff]
        %v315 = vld [vmem:[#allocation2 + $0x3c8] sm:$0xff]
        %v316 = vld [vmem:[#allocation2 + $0x3d0] sm:$0xff]
        %v317 = vld [vmem:[#allocation2 + $0x3d8] sm:$0xff]
        %v318 = vld [vmem:[#allocation2 + $0x3e0] sm:$0xff]
        %v319 = vld [vmem:[#allocation2 + $0x3e8] sm:$0xff]
        %v320 = vld [vmem:[#allocation2 + $0x3f0] sm:$0xff]
        %v321 = vld [vmem:[#allocation2 + $0x3f8] sm:$0xff]
        %v322 = vld [vmem:[#allocation2 + $0x400] sm:$0xff]
        %v323 = vld [vmem:[#allocation2 + $0x408] sm:$0xff]
        %v324 = vld [vmem:[#allocation2 + $0x410] sm:$0xff]
        %v325 = vld [vmem:[#allocation2 + $0x418] sm:$0xff]
        %v326 = vld [vmem:[#allocation2 + $0x420] sm:$0xff]
        %v327 = vld [vmem:[#allocation2 + $0x428] sm:$0xff]
        %v328 = vld [vmem:[#allocation2 + $0x430] sm:$0xff]
        %v329 = vld [vmem:[#allocation2 + $0x438] sm:$0xff]
        %v330 = vld [vmem:[#allocation2 + $0x440] sm:$0xff]
        %v331 = vld [vmem:[#allocation2 + $0x448] sm:$0xff]
        %v332 = vld [vmem:[#allocation2 + $0x450] sm:$0xff]
        %v333 = vld [vmem:[#allocation2 + $0x458] sm:$0xff]
        %v334 = vld [vmem:[#allocation2 + $0x460] sm:$0xff]
        %v335 = vld [vmem:[#allocation2 + $0x468] sm:$0xff]
        %v336 = vld [vmem:[#allocation2 + $0x470] sm:$0xff]
        %v337 = vld [vmem:[#allocation2 + $0x478] sm:$0xff]
        %v338 = vld [vmem:[#allocation2 + $0x480] sm:$0xff]
        %v339 = vld [vmem:[#allocation2 + $0x488] sm:$0xff]
        %v340 = vld [vmem:[#allocation2 + $0x490] sm:$0xff]
        %v341 = vld [vmem:[#allocation2 + $0x498] sm:$0xff]
        %v342 = vld [vmem:[#allocation2 + $0x4a0] sm:$0xff]
        %v343 = vld [vmem:[#allocation2 + $0x4a8] sm:$0xff]
        %v344 = vld [vmem:[#allocation2 + $0x4b0] sm:$0xff]
        %v345 = vld [vmem:[#allocation2 + $0x4b8] sm:$0xff]
        %v346 = vld [vmem:[#allocation2 + $0x4c0] sm:$0xff]
        %v347 = vld [vmem:[#allocation2 + $0x4c8] sm:$0xff]
        %v348 = vld [vmem:[#allocation2 + $0x4d0] sm:$0xff]
        %v349 = vld [vmem:[#allocation2 + $0x4d8] sm:$0xff]
        %v350 = vld [vmem:[#allocation2 + $0x4e0] sm:$0xff]
        %v351 = vld [vmem:[#allocation2 + $0x4e8] sm:$0xff]
        %v352 = vld [vmem:[#allocation2 + $0x4f0] sm:$0xff]
        %v353 = vld [vmem:[#allocation2 + $0x4f8] sm:$0xff]
        %v354 = vld [vmem:[#allocation2 + $0x500] sm:$0xff]
        %v355 = vld [vmem:[#allocation2 + $0x508] sm:$0xff]
        %v356 = vld [vmem:[#allocation2 + $0x510] sm:$0xff]
        %v357 = vld [vmem:[#allocation2 + $0x518] sm:$0xff]
        %v358 = vld [vmem:[#allocation2 + $0x520] sm:$0xff]
        %v359 = vld [vmem:[#allocation2 + $0x528] sm:$0xff]
        %v360 = vld [vmem:[#allocation2 + $0x530] sm:$0xff]
        %v361 = vld [vmem:[#allocation2 + $0x538] sm:$0xff]
        %v362 = vld [vmem:[#allocation2 + $0x540] sm:$0xff]
        %v363 = vld [vmem:[#allocation2 + $0x548] sm:$0xff]
        %v364 = vld [vmem:[#allocation2 + $0x550] sm:$0xff]
        %v365 = vld [vmem:[#allocation2 + $0x558] sm:$0xff]
        %v366 = vld [vmem:[#allocation2 + $0x560] sm:$0xff]
        %v367 = vld [vmem:[#allocation2 + $0x568] sm:$0xff]
        %v368 = vld [vmem:[#allocation2 + $0x570] sm:$0xff]
        %v369 = vld [vmem:[#allocation2 + $0x578] sm:$0xff]
        %v370 = vld [vmem:[#allocation2 + $0x580] sm:$0xff]
        %v371 = vld [vmem:[#allocation2 + $0x588] sm:$0xff]
        %v372 = vld [vmem:[#allocation2 + $0x590] sm:$0xff]
        %v373 = vld [vmem:[#allocation2 + $0x598] sm:$0xff]
        %v374 = vld [vmem:[#allocation2 + $0x5a0] sm:$0xff]
        %v375 = vld [vmem:[#allocation2 + $0x5a8] sm:$0xff]
        %v376 = vld [vmem:[#allocation2 + $0x5b0] sm:$0xff]
        %v377 = vld [vmem:[#allocation2 + $0x5b8] sm:$0xff]
        %v378 = vld [vmem:[#allocation2 + $0x5c0] sm:$0xff]
        %v379 = vld [vmem:[#allocation2 + $0x5c8] sm:$0xff]
        %v380 = vld [vmem:[#allocation2 + $0x5d0] sm:$0xff]
        %v381 = vld [vmem:[#allocation2 + $0x5d8] sm:$0xff]
        %v382 = vld [vmem:[#allocation2 + $0x5e0] sm:$0xff]
        %v383 = vld [vmem:[#allocation2 + $0x5e8] sm:$0xff]
        %v384 = vld [vmem:[#allocation2 + $0x5f0] sm:$0xff]
        %v385 = vld [vmem:[#allocation2 + $0x5f8] sm:$0xff]
        %v386 = vld [vmem:[#allocation2 + $0x600] sm:$0xff]
        %v387 = vld [vmem:[#allocation2 + $0x608] sm:$0xff]
        %v388 = vld [vmem:[#allocation2 + $0x610] sm:$0xff]
        %v389 = vld [vmem:[#allocation2 + $0x618] sm:$0xff]
        %v390 = vld [vmem:[#allocation2 + $0x620] sm:$0xff]
        %v391 = vld [vmem:[#allocation2 + $0x628] sm:$0xff]
        %v392 = vld [vmem:[#allocation2 + $0x630] sm:$0xff]
        %v393 = vld [vmem:[#allocation2 + $0x638] sm:$0xff]
        %v394 = vld [vmem:[#allocation2 + $0x640] sm:$0xff]
        %v395 = vld [vmem:[#allocation2 + $0x648] sm:$0xff]
        %v396 = vld [vmem:[#allocation2 + $0x650] sm:$0xff]
        %v397 = vld [vmem:[#allocation2 + $0x658] sm:$0xff]
        %v398 = vld [vmem:[#allocation2 + $0x660] sm:$0xff]
        %v399 = vld [vmem:[#allocation2 + $0x668] sm:$0xff]
        %v400 = vld [vmem:[#allocation2 + $0x670] sm:$0xff]
        %v401 = vld [vmem:[#allocation2 + $0x678] sm:$0xff]
        %v402 = vld [vmem:[#allocation2 + $0x680] sm:$0xff]
        %v403 = vld [vmem:[#allocation2 + $0x688] sm:$0xff]
        %v404 = vld [vmem:[#allocation2 + $0x690] sm:$0xff]
        %v405 = vld [vmem:[#allocation2 + $0x698] sm:$0xff]
        %v406 = vld [vmem:[#allocation2 + $0x6a0] sm:$0xff]
        %v407 = vld [vmem:[#allocation2 + $0x6a8] sm:$0xff]
        %v408 = vld [vmem:[#allocation2 + $0x6b0] sm:$0xff]
        %v409 = vld [vmem:[#allocation2 + $0x6b8] sm:$0xff]
        %v410 = vld [vmem:[#allocation2 + $0x6c0] sm:$0xff]
        %v411 = vld [vmem:[#allocation2 + $0x6c8] sm:$0xff]
        %v412 = vld [vmem:[#allocation2 + $0x6d0] sm:$0xff]
        %v413 = vld [vmem:[#allocation2 + $0x6d8] sm:$0xff]
        %v414 = vld [vmem:[#allocation2 + $0x6e0] sm:$0xff]
        %v415 = vld [vmem:[#allocation2 + $0x6e8] sm:$0xff]
        %v416 = vld [vmem:[#allocation2 + $0x6f0] sm:$0xff]
        %v417 = vld [vmem:[#allocation2 + $0x6f8] sm:$0xff]
        %v418 = vld [vmem:[#allocation2 + $0x700] sm:$0xff]
        %v419 = vld [vmem:[#allocation2 + $0x708] sm:$0xff]
        %v420 = vld [vmem:[#allocation2 + $0x710] sm:$0xff]
        %v421 = vld [vmem:[#allocation2 + $0x718] sm:$0xff]
        %v422 = vld [vmem:[#allocation2 + $0x720] sm:$0xff]
        %v423 = vld [vmem:[#allocation2 + $0x728] sm:$0xff]
        %v424 = vld [vmem:[#allocation2 + $0x730] sm:$0xff]
        %v425 = vld [vmem:[#allocation2 + $0x738] sm:$0xff]
        %v426 = vld [vmem:[#allocation2 + $0x740] sm:$0xff]
        %v427 = vld [vmem:[#allocation2 + $0x748] sm:$0xff]
        %v428 = vld [vmem:[#allocation2 + $0x750] sm:$0xff]
        %v429 = vld [vmem:[#allocation2 + $0x758] sm:$0xff]
        %v430 = vld [vmem:[#allocation2 + $0x760] sm:$0xff]
        %v431 = vld [vmem:[#allocation2 + $0x768] sm:$0xff]
        %v432 = vld [vmem:[#allocation2 + $0x770] sm:$0xff]
        %v433 = vld [vmem:[#allocation2 + $0x778] sm:$0xff]
        %vm444 = vcmask 1046528
        %v445 = vrot.slane %v184, 1
        %v446 = vrot.slane %v186, 1
        %v447 = vsel %vm444, %v445, %v446
        %v448 = vrot.slane %v185, 1
        %v449 = vrot.slane %v187, 1
        %v450 = vsel %vm444, %v448, %v449
        %v451 = vrot.slane %v188, 1
        %v452 = vsel %vm444, %v446, %v451
        %v453 = vrot.slane %v189, 1
        %v454 = vsel %vm444, %v449, %v453
        %v455 = vrot.slane %v190, 1
        %v456 = vsel %vm444, %v451, %v455
        %v457 = vrot.slane %v191, 1
        %v458 = vsel %vm444, %v453, %v457
        %v459 = vrot.slane %v192, 1
        %v460 = vsel %vm444, %v455, %v459
        %v461 = vrot.slane %v193, 1
        %v462 = vsel %vm444, %v457, %v461
        %vm467 = vcmask 261120
        %v468 = vsel %vm467, %v450, 0
        %v470 = vsel %vm467, %v454, 0
        %v472 = vsel %vm467, %v458, 0
        %v474 = vsel %vm467, %v462, 0
        %476 = vmatprep.subr.mxu0 %v335
        %477 = vmatpush1.msra.mxu0 %v334
        %478 = vmatprep.subr.mxu0 %v331
        %479 = vmatpush1.msra.mxu0 %v330
        %480 = vmatprep.subr.mxu0 %v327
        %481 = vmatpush1.msra.mxu0 %v326
        %482 = vmatprep.subr.mxu0 %v323
        %483 = vmatpush1.msra.mxu0 %v322
        %484 = vmatprep.subr.mxu0 %v319
        %485 = vmatpush1.msra.mxu0 %v318
        %486 = vmatprep.subr.mxu0 %v315
        %487 = vmatpush1.msra.mxu0 %v314
        %488 = vmatprep.subr.mxu0 %v311
        %489 = vmatpush1.msra.mxu0 %v310
        %490 = vmatprep.subr.mxu0 %v307
        %491 = vmatpush1.msra.mxu0 %v306
        %492 = vmatprep.subr.mxu0 %v303
        %493 = vmatpush1.msra.mxu0 %v302
        %494 = vmatprep.subr.mxu0 %v299
        %495 = vmatpush1.msra.mxu0 %v298
        %496 = vmatprep.subr.mxu0 %v295
        %497 = vmatpush1.msra.mxu0 %v294
        %498 = vmatprep.subr.mxu0 %v291
        %499 = vmatpush1.msra.mxu0 %v290
        %500 = vmatprep.subr.mxu0 %v287
        %501 = vmatpush1.msra.mxu0 %v286
        %502 = vmatprep.subr.mxu0 %v283
        %503 = vmatpush1.msra.mxu0 %v282
        %504 = vmatprep.subr.mxu0 %v279
        %505 = vmatpush1.msra.mxu0 %v278
        %506 = vmatprep.subr.mxu0 %v275
        %507 = vmatpush1.msra.mxu0 %v274
        %508 = vmatprep.subr.mxu0 0.0
        %509 = vmatpush2.msra.mxu0 0.0
        %510 = vmatprep.subr.mxu0 0.0
        %511 = vmatpush2.msra.mxu0 0.0
        %512 = vmatprep.subr.mxu0 0.0
        %513 = vmatpush2.msra.mxu0 0.0
        %514 = vmatprep.subr.mxu0 0.0
        %515 = vmatpush2.msra.mxu0 0.0
        %516 = vmatprep.subr.mxu0 0.0
        %517 = vmatpush2.msra.mxu0 0.0
        %518 = vmatprep.subr.mxu0 0.0
        %519 = vmatpush2.msra.mxu0 0.0
        %520 = vmatprep.subr.mxu0 0.0
        %521 = vmatpush2.msra.mxu0 0.0
        %522 = vmatprep.subr.mxu0 0.0
        %523 = vmatpush2.msra.mxu0 0.0
        %524 = vmatprep.subr.mxu0 0.0
        %525 = vmatpush2.msra.mxu0 0.0
        %526 = vmatprep.subr.mxu0 0.0
        %527 = vmatpush2.msra.mxu0 0.0
        %528 = vmatprep.subr.mxu0 0.0
        %529 = vmatpush2.msra.mxu0 0.0
        %530 = vmatprep.subr.mxu0 0.0
        %531 = vmatpush2.msra.mxu0 0.0
        %532 = vmatprep.subr.mxu0 %v351
        %533 = vmatpush2.msra.mxu0 %v350
        %534 = vmatprep.subr.mxu0 %v347
        %535 = vmatpush2.msra.mxu0 %v346
        %536 = vmatprep.subr.mxu0 %v343
        %537 = vmatpush2.msra.mxu0 %v342
        %538 = vmatprep.subr.mxu0 %v339
        %539 = vmatpush2.msra.mxu0 %v338
        %540 = vmatprep.mubr.f32.mxu0 %v468
        %541 = vmatmul.mubr.f32.gmra.mxu0 %v447
        %v542 = vpop.f32.mrf.mxu0
        %v543 = vadd.f32 0.0, %v542
        %v544 = vpop.f32.mrf.mxu0
        %v545 = vadd.f32 0.0, %v544
        %546 = vmatprep.mubr.f32.mxu0 %v470
        %547 = vmatmul.mubr.f32.gmra.mxu0 %v452
        %v548 = vpop.f32.mrf.mxu0
        %v549 = vadd.f32 0.0, %v548
        %v550 = vpop.f32.mrf.mxu0
        %v551 = vadd.f32 0.0, %v550
        %552 = vmatprep.mubr.f32.mxu0 %v472
        %553 = vmatmul.mubr.f32.gmra.mxu0 %v456
        %v554 = vpop.f32.mrf.mxu0
        %v555 = vadd.f32 0.0, %v554
        %v556 = vpop.f32.mrf.mxu0
        %v557 = vadd.f32 0.0, %v556
        %558 = vmatprep.mubr.f32.mxu0 %v474
        %559 = vmatmul.mubr.f32.gmra.mxu0 %v460
        %v560 = vpop.f32.mrf.mxu0
        %v561 = vadd.f32 0.0, %v560
        %v562 = vpop.f32.mrf.mxu0
        %v563 = vadd.f32 0.0, %v562
        %564 = vdwg.mxu0
        %565 = vmatprep.subr.mxu0 %v337
        %566 = vmatpush1.msra.mxu0 %v336
        %567 = vmatprep.subr.mxu0 %v333
        %568 = vmatpush1.msra.mxu0 %v332
        %569 = vmatprep.subr.mxu0 %v329
        %570 = vmatpush1.msra.mxu0 %v328
        %571 = vmatprep.subr.mxu0 %v325
        %572 = vmatpush1.msra.mxu0 %v324
        %573 = vmatprep.subr.mxu0 %v321
        %574 = vmatpush1.msra.mxu0 %v320
        %575 = vmatprep.subr.mxu0 %v317
        %576 = vmatpush1.msra.mxu0 %v316
        %577 = vmatprep.subr.mxu0 %v313
        %578 = vmatpush1.msra.mxu0 %v312
        %579 = vmatprep.subr.mxu0 %v309
        %580 = vmatpush1.msra.mxu0 %v308
        %581 = vmatprep.subr.mxu0 %v305
        %582 = vmatpush1.msra.mxu0 %v304
        %583 = vmatprep.subr.mxu0 %v301
        %584 = vmatpush1.msra.mxu0 %v300
        %585 = vmatprep.subr.mxu0 %v297
        %586 = vmatpush1.msra.mxu0 %v296
        %587 = vmatprep.subr.mxu0 %v293
        %588 = vmatpush1.msra.mxu0 %v292
        %589 = vmatprep.subr.mxu0 %v289
        %590 = vmatpush1.msra.mxu0 %v288
        %591 = vmatprep.subr.mxu0 %v285
        %592 = vmatpush1.msra.mxu0 %v284
        %593 = vmatprep.subr.mxu0 %v281
        %594 = vmatpush1.msra.mxu0 %v280
        %595 = vmatprep.subr.mxu0 %v277
        %596 = vmatpush1.msra.mxu0 %v276
        %597 = vmatprep.subr.mxu0 0.0
        %598 = vmatpush2.msra.mxu0 0.0
        %599 = vmatprep.subr.mxu0 0.0
        %600 = vmatpush2.msra.mxu0 0.0
        %601 = vmatprep.subr.mxu0 0.0
        %602 = vmatpush2.msra.mxu0 0.0
        %603 = vmatprep.subr.mxu0 0.0
        %604 = vmatpush2.msra.mxu0 0.0
        %605 = vmatprep.subr.mxu0 0.0
        %606 = vmatpush2.msra.mxu0 0.0
        %607 = vmatprep.subr.mxu0 0.0
        %608 = vmatpush2.msra.mxu0 0.0
        %609 = vmatprep.subr.mxu0 0.0
        %610 = vmatpush2.msra.mxu0 0.0
        %611 = vmatprep.subr.mxu0 0.0
        %612 = vmatpush2.msra.mxu0 0.0
        %613 = vmatprep.subr.mxu0 0.0
        %614 = vmatpush2.msra.mxu0 0.0
        %615 = vmatprep.subr.mxu0 0.0
        %616 = vmatpush2.msra.mxu0 0.0
        %617 = vmatprep.subr.mxu0 0.0
        %618 = vmatpush2.msra.mxu0 0.0
        %619 = vmatprep.subr.mxu0 0.0
        %620 = vmatpush2.msra.mxu0 0.0
        %621 = vmatprep.subr.mxu0 %v353
        %622 = vmatpush2.msra.mxu0 %v352
        %623 = vmatprep.subr.mxu0 %v349
        %624 = vmatpush2.msra.mxu0 %v348
        %625 = vmatprep.subr.mxu0 %v345
        %626 = vmatpush2.msra.mxu0 %v344
        %627 = vmatprep.subr.mxu0 %v341
        %628 = vmatpush2.msra.mxu0 %v340
        %629 = vmatprep.mubr.f32.mxu0 %v468
        %630 = vmatmul.mubr.f32.gmra.mxu0 %v447
        %v631 = vpop.f32.mrf.mxu0
        %v632 = vadd.f32 0.0, %v631
        %v633 = vpop.f32.mrf.mxu0
        %v634 = vadd.f32 0.0, %v633
        %635 = vmatprep.mubr.f32.mxu0 %v470
        %636 = vmatmul.mubr.f32.gmra.mxu0 %v452
        %v637 = vpop.f32.mrf.mxu0
        %v638 = vadd.f32 0.0, %v637
        %v639 = vpop.f32.mrf.mxu0
        %v640 = vadd.f32 0.0, %v639
        %641 = vmatprep.mubr.f32.mxu0 %v472
        %642 = vmatmul.mubr.f32.gmra.mxu0 %v456
        %v643 = vpop.f32.mrf.mxu0
        %v644 = vadd.f32 0.0, %v643
        %v645 = vpop.f32.mrf.mxu0
        %v646 = vadd.f32 0.0, %v645
        %647 = vmatprep.mubr.f32.mxu0 %v474
        %648 = vmatmul.mubr.f32.gmra.mxu0 %v460
        %v649 = vpop.f32.mrf.mxu0
        %v650 = vadd.f32 0.0, %v649
        %v651 = vpop.f32.mrf.mxu0
        %v652 = vadd.f32 0.0, %v651
        %653 = vdwg.mxu0
        %v654 = vsel %vm467, %v185, 0
        %v656 = vsel %vm467, %v187, 0
        %v658 = vsel %vm467, %v189, 0
        %v660 = vsel %vm467, %v191, 0
        %662 = vmatprep.subr.mxu0 %v255
        %663 = vmatpush1.msra.mxu0 %v254
        %664 = vmatprep.subr.mxu0 %v251
        %665 = vmatpush1.msra.mxu0 %v250
        %666 = vmatprep.subr.mxu0 %v247
        %667 = vmatpush1.msra.mxu0 %v246
        %668 = vmatprep.subr.mxu0 %v243
        %669 = vmatpush1.msra.mxu0 %v242
        %670 = vmatprep.subr.mxu0 %v239
        %671 = vmatpush1.msra.mxu0 %v238
        %672 = vmatprep.subr.mxu0 %v235
        %673 = vmatpush1.msra.mxu0 %v234
        %674 = vmatprep.subr.mxu0 %v231
        %675 = vmatpush1.msra.mxu0 %v230
        %676 = vmatprep.subr.mxu0 %v227
        %677 = vmatpush1.msra.mxu0 %v226
        %678 = vmatprep.subr.mxu0 %v223
        %679 = vmatpush1.msra.mxu0 %v222
        %680 = vmatprep.subr.mxu0 %v219
        %681 = vmatpush1.msra.mxu0 %v218
        %682 = vmatprep.subr.mxu0 %v215
        %683 = vmatpush1.msra.mxu0 %v214
        %684 = vmatprep.subr.mxu0 %v211
        %685 = vmatpush1.msra.mxu0 %v210
        %686 = vmatprep.subr.mxu0 %v207
        %687 = vmatpush1.msra.mxu0 %v206
        %688 = vmatprep.subr.mxu0 %v203
        %689 = vmatpush1.msra.mxu0 %v202
        %690 = vmatprep.subr.mxu0 %v199
        %691 = vmatpush1.msra.mxu0 %v198
        %692 = vmatprep.subr.mxu0 %v195
        %693 = vmatpush1.msra.mxu0 %v194
        %694 = vmatprep.subr.mxu0 0.0
        %695 = vmatpush2.msra.mxu0 0.0
        %696 = vmatprep.subr.mxu0 0.0
        %697 = vmatpush2.msra.mxu0 0.0
        %698 = vmatprep.subr.mxu0 0.0
        %699 = vmatpush2.msra.mxu0 0.0
        %700 = vmatprep.subr.mxu0 0.0
        %701 = vmatpush2.msra.mxu0 0.0
        %702 = vmatprep.subr.mxu0 0.0
        %703 = vmatpush2.msra.mxu0 0.0
        %704 = vmatprep.subr.mxu0 0.0
        %705 = vmatpush2.msra.mxu0 0.0
        %706 = vmatprep.subr.mxu0 0.0
        %707 = vmatpush2.msra.mxu0 0.0
        %708 = vmatprep.subr.mxu0 0.0
        %709 = vmatpush2.msra.mxu0 0.0
        %710 = vmatprep.subr.mxu0 0.0
        %711 = vmatpush2.msra.mxu0 0.0
        %712 = vmatprep.subr.mxu0 0.0
        %713 = vmatpush2.msra.mxu0 0.0
        %714 = vmatprep.subr.mxu0 0.0
        %715 = vmatpush2.msra.mxu0 0.0
        %716 = vmatprep.subr.mxu0 0.0
        %717 = vmatpush2.msra.mxu0 0.0
        %718 = vmatprep.subr.mxu0 %v271
        %719 = vmatpush2.msra.mxu0 %v270
        %720 = vmatprep.subr.mxu0 %v267
        %721 = vmatpush2.msra.mxu0 %v266
        %722 = vmatprep.subr.mxu0 %v263
        %723 = vmatpush2.msra.mxu0 %v262
        %724 = vmatprep.subr.mxu0 %v259
        %725 = vmatpush2.msra.mxu0 %v258
        %726 = vmatprep.mubr.f32.mxu0 %v654
        %727 = vmatmul.mubr.f32.gmra.mxu0 %v184
        %v728 = vpop.f32.mrf.mxu0
        %v729 = vadd.f32 %v543, %v728
        %v730 = vpop.f32.mrf.mxu0
        %v731 = vadd.f32 %v545, %v730
        %732 = vmatprep.mubr.f32.mxu0 %v656
        %733 = vmatmul.mubr.f32.gmra.mxu0 %v186
        %v734 = vpop.f32.mrf.mxu0
        %v735 = vadd.f32 %v549, %v734
        %v736 = vpop.f32.mrf.mxu0
        %v737 = vadd.f32 %v551, %v736
        %738 = vmatprep.mubr.f32.mxu0 %v658
        %739 = vmatmul.mubr.f32.gmra.mxu0 %v188
        %v740 = vpop.f32.mrf.mxu0
        %v741 = vadd.f32 %v555, %v740
        %v742 = vpop.f32.mrf.mxu0
        %v743 = vadd.f32 %v557, %v742
        %744 = vmatprep.mubr.f32.mxu0 %v660
        %745 = vmatmul.mubr.f32.gmra.mxu0 %v190
        %v746 = vpop.f32.mrf.mxu0
        %v747 = vadd.f32 %v561, %v746
        %v748 = vpop.f32.mrf.mxu0
        %v749 = vadd.f32 %v563, %v748
        %750 = vdwg.mxu0
        %751 = vmatprep.subr.mxu0 %v257
        %752 = vmatpush1.msra.mxu0 %v256
        %753 = vmatprep.subr.mxu0 %v253
        %754 = vmatpush1.msra.mxu0 %v252
        %755 = vmatprep.subr.mxu0 %v249
        %756 = vmatpush1.msra.mxu0 %v248
        %757 = vmatprep.subr.mxu0 %v245
        %758 = vmatpush1.msra.mxu0 %v244
        %759 = vmatprep.subr.mxu0 %v241
        %760 = vmatpush1.msra.mxu0 %v240
        %761 = vmatprep.subr.mxu0 %v237
        %762 = vmatpush1.msra.mxu0 %v236
        %763 = vmatprep.subr.mxu0 %v233
        %764 = vmatpush1.msra.mxu0 %v232
        %765 = vmatprep.subr.mxu0 %v229
        %766 = vmatpush1.msra.mxu0 %v228
        %767 = vmatprep.subr.mxu0 %v225
        %768 = vmatpush1.msra.mxu0 %v224
        %769 = vmatprep.subr.mxu0 %v221
        %770 = vmatpush1.msra.mxu0 %v220
        %771 = vmatprep.subr.mxu0 %v217
        %772 = vmatpush1.msra.mxu0 %v216
        %773 = vmatprep.subr.mxu0 %v213
        %774 = vmatpush1.msra.mxu0 %v212
        %775 = vmatprep.subr.mxu0 %v209
        %776 = vmatpush1.msra.mxu0 %v208
        %777 = vmatprep.subr.mxu0 %v205
        %778 = vmatpush1.msra.mxu0 %v204
        %779 = vmatprep.subr.mxu0 %v201
        %780 = vmatpush1.msra.mxu0 %v200
        %781 = vmatprep.subr.mxu0 %v197
        %782 = vmatpush1.msra.mxu0 %v196
        %783 = vmatprep.subr.mxu0 0.0
        %784 = vmatpush2.msra.mxu0 0.0
        %785 = vmatprep.subr.mxu0 0.0
        %786 = vmatpush2.msra.mxu0 0.0
        %787 = vmatprep.subr.mxu0 0.0
        %788 = vmatpush2.msra.mxu0 0.0
        %789 = vmatprep.subr.mxu0 0.0
        %790 = vmatpush2.msra.mxu0 0.0
        %791 = vmatprep.subr.mxu0 0.0
        %792 = vmatpush2.msra.mxu0 0.0
        %793 = vmatprep.subr.mxu0 0.0
        %794 = vmatpush2.msra.mxu0 0.0
        %795 = vmatprep.subr.mxu0 0.0
        %796 = vmatpush2.msra.mxu0 0.0
        %797 = vmatprep.subr.mxu0 0.0
        %798 = vmatpush2.msra.mxu0 0.0
        %799 = vmatprep.subr.mxu0 0.0
        %800 = vmatpush2.msra.mxu0 0.0
        %801 = vmatprep.subr.mxu0 0.0
        %802 = vmatpush2.msra.mxu0 0.0
        %803 = vmatprep.subr.mxu0 0.0
        %804 = vmatpush2.msra.mxu0 0.0
        %805 = vmatprep.subr.mxu0 0.0
        %806 = vmatpush2.msra.mxu0 0.0
        %807 = vmatprep.subr.mxu0 %v273
        %808 = vmatpush2.msra.mxu0 %v272
        %809 = vmatprep.subr.mxu0 %v269
        %810 = vmatpush2.msra.mxu0 %v268
        %811 = vmatprep.subr.mxu0 %v265
        %812 = vmatpush2.msra.mxu0 %v264
        %813 = vmatprep.subr.mxu0 %v261
        %814 = vmatpush2.msra.mxu0 %v260
        %815 = vmatprep.mubr.f32.mxu0 %v654
        %816 = vmatmul.mubr.f32.gmra.mxu0 %v184
        %v817 = vpop.f32.mrf.mxu0
        %v818 = vadd.f32 %v632, %v817
        %v819 = vpop.f32.mrf.mxu0
        %v820 = vadd.f32 %v634, %v819
        %821 = vmatprep.mubr.f32.mxu0 %v656
        %822 = vmatmul.mubr.f32.gmra.mxu0 %v186
        %v823 = vpop.f32.mrf.mxu0
        %v824 = vadd.f32 %v638, %v823
        %v825 = vpop.f32.mrf.mxu0
        %v826 = vadd.f32 %v640, %v825
        %827 = vmatprep.mubr.f32.mxu0 %v658
        %828 = vmatmul.mubr.f32.gmra.mxu0 %v188
        %v829 = vpop.f32.mrf.mxu0
        %v830 = vadd.f32 %v644, %v829
        %v831 = vpop.f32.mrf.mxu0
        %v832 = vadd.f32 %v646, %v831
        %833 = vmatprep.mubr.f32.mxu0 %v660
        %834 = vmatmul.mubr.f32.gmra.mxu0 %v190
        %v835 = vpop.f32.mrf.mxu0
        %v836 = vadd.f32 %v650, %v835
        %v837 = vpop.f32.mrf.mxu0
        %v838 = vadd.f32 %v652, %v837
        %839 = vdwg.mxu0
        %vm840 = vcmask 1045504
        %v841 = vrot.slane %v184, 2
        %v842 = vrot.slane %v186, 2
        %v843 = vsel %vm840, %v841, %v842
        %v844 = vrot.slane %v185, 2
        %v845 = vrot.slane %v187, 2
        %v846 = vsel %vm840, %v844, %v845
        %v847 = vrot.slane %v188, 2
        %v848 = vsel %vm840, %v842, %v847
        %v849 = vrot.slane %v189, 2
        %v850 = vsel %vm840, %v845, %v849
        %v851 = vrot.slane %v190, 2
        %v852 = vsel %vm840, %v847, %v851
        %v853 = vrot.slane %v191, 2
        %v854 = vsel %vm840, %v849, %v853
        %v855 = vrot.slane %v192, 2
        %v856 = vsel %vm840, %v851, %v855
        %v857 = vrot.slane %v193, 2
        %v858 = vsel %vm840, %v853, %v857
        %v863 = vsel %vm467, %v846, 0
        %v865 = vsel %vm467, %v850, 0
        %v867 = vsel %vm467, %v854, 0
        %v869 = vsel %vm467, %v858, 0
        %871 = vmatprep.subr.mxu0 %v415
        %872 = vmatpush1.msra.mxu0 %v414
        %873 = vmatprep.subr.mxu0 %v411
        %874 = vmatpush1.msra.mxu0 %v410
        %875 = vmatprep.subr.mxu0 %v407
        %876 = vmatpush1.msra.mxu0 %v406
        %877 = vmatprep.subr.mxu0 %v403
        %878 = vmatpush1.msra.mxu0 %v402
        %879 = vmatprep.subr.mxu0 %v399
        %880 = vmatpush1.msra.mxu0 %v398
        %881 = vmatprep.subr.mxu0 %v395
        %882 = vmatpush1.msra.mxu0 %v394
        %883 = vmatprep.subr.mxu0 %v391
        %884 = vmatpush1.msra.mxu0 %v390
        %885 = vmatprep.subr.mxu0 %v387
        %886 = vmatpush1.msra.mxu0 %v386
        %887 = vmatprep.subr.mxu0 %v383
        %888 = vmatpush1.msra.mxu0 %v382
        %889 = vmatprep.subr.mxu0 %v379
        %890 = vmatpush1.msra.mxu0 %v378
        %891 = vmatprep.subr.mxu0 %v375
        %892 = vmatpush1.msra.mxu0 %v374
        %893 = vmatprep.subr.mxu0 %v371
        %894 = vmatpush1.msra.mxu0 %v370
        %895 = vmatprep.subr.mxu0 %v367
        %896 = vmatpush1.msra.mxu0 %v366
        %897 = vmatprep.subr.mxu0 %v363
        %898 = vmatpush1.msra.mxu0 %v362
        %899 = vmatprep.subr.mxu0 %v359
        %900 = vmatpush1.msra.mxu0 %v358
        %901 = vmatprep.subr.mxu0 %v355
        %902 = vmatpush1.msra.mxu0 %v354
        %903 = vmatprep.subr.mxu0 0.0
        %904 = vmatpush2.msra.mxu0 0.0
        %905 = vmatprep.subr.mxu0 0.0
        %906 = vmatpush2.msra.mxu0 0.0
        %907 = vmatprep.subr.mxu0 0.0
        %908 = vmatpush2.msra.mxu0 0.0
        %909 = vmatprep.subr.mxu0 0.0
        %910 = vmatpush2.msra.mxu0 0.0
        %911 = vmatprep.subr.mxu0 0.0
        %912 = vmatpush2.msra.mxu0 0.0
        %913 = vmatprep.subr.mxu0 0.0
        %914 = vmatpush2.msra.mxu0 0.0
        %915 = vmatprep.subr.mxu0 0.0
        %916 = vmatpush2.msra.mxu0 0.0
        %917 = vmatprep.subr.mxu0 0.0
        %918 = vmatpush2.msra.mxu0 0.0
        %919 = vmatprep.subr.mxu0 0.0
        %920 = vmatpush2.msra.mxu0 0.0
        %921 = vmatprep.subr.mxu0 0.0
        %922 = vmatpush2.msra.mxu0 0.0
        %923 = vmatprep.subr.mxu0 0.0
        %924 = vmatpush2.msra.mxu0 0.0
        %925 = vmatprep.subr.mxu0 0.0
        %926 = vmatpush2.msra.mxu0 0.0
        %927 = vmatprep.subr.mxu0 %v431
        %928 = vmatpush2.msra.mxu0 %v430
        %929 = vmatprep.subr.mxu0 %v427
        %930 = vmatpush2.msra.mxu0 %v426
        %931 = vmatprep.subr.mxu0 %v423
        %932 = vmatpush2.msra.mxu0 %v422
        %933 = vmatprep.subr.mxu0 %v419
        %934 = vmatpush2.msra.mxu0 %v418
        %935 = vmatprep.mubr.f32.mxu0 %v863
        %936 = vmatmul.mubr.f32.gmra.mxu0 %v843
        %v937 = vpop.f32.mrf.mxu0
        %v938 = vadd.f32 0.0, %v937
        %v939 = vpop.f32.mrf.mxu0
        %v940 = vadd.f32 0.0, %v939
        %941 = vmatprep.mubr.f32.mxu0 %v865
        %942 = vmatmul.mubr.f32.gmra.mxu0 %v848
        %v943 = vpop.f32.mrf.mxu0
        %v944 = vadd.f32 0.0, %v943
        %v945 = vpop.f32.mrf.mxu0
        %v946 = vadd.f32 0.0, %v945
        %947 = vmatprep.mubr.f32.mxu0 %v867
        %948 = vmatmul.mubr.f32.gmra.mxu0 %v852
        %v949 = vpop.f32.mrf.mxu0
        %v950 = vadd.f32 0.0, %v949
        %v951 = vpop.f32.mrf.mxu0
        %v952 = vadd.f32 0.0, %v951
        %953 = vmatprep.mubr.f32.mxu0 %v869
        %954 = vmatmul.mubr.f32.gmra.mxu0 %v856
        %v955 = vpop.f32.mrf.mxu0
        %v956 = vadd.f32 0.0, %v955
        %v957 = vpop.f32.mrf.mxu0
        %v958 = vadd.f32 0.0, %v957
        %959 = vdwg.mxu0
        %960 = vmatprep.subr.mxu0 %v417
        %961 = vmatpush1.msra.mxu0 %v416
        %962 = vmatprep.subr.mxu0 %v413
        %963 = vmatpush1.msra.mxu0 %v412
        %964 = vmatprep.subr.mxu0 %v409
        %965 = vmatpush1.msra.mxu0 %v408
        %966 = vmatprep.subr.mxu0 %v405
        %967 = vmatpush1.msra.mxu0 %v404
        %968 = vmatprep.subr.mxu0 %v401
        %969 = vmatpush1.msra.mxu0 %v400
        %970 = vmatprep.subr.mxu0 %v397
        %971 = vmatpush1.msra.mxu0 %v396
        %972 = vmatprep.subr.mxu0 %v393
        %973 = vmatpush1.msra.mxu0 %v392
        %974 = vmatprep.subr.mxu0 %v389
        %975 = vmatpush1.msra.mxu0 %v388
        %976 = vmatprep.subr.mxu0 %v385
        %977 = vmatpush1.msra.mxu0 %v384
        %978 = vmatprep.subr.mxu0 %v381
        %979 = vmatpush1.msra.mxu0 %v380
        %980 = vmatprep.subr.mxu0 %v377
        %981 = vmatpush1.msra.mxu0 %v376
        %982 = vmatprep.subr.mxu0 %v373
        %983 = vmatpush1.msra.mxu0 %v372
        %984 = vmatprep.subr.mxu0 %v369
        %985 = vmatpush1.msra.mxu0 %v368
        %986 = vmatprep.subr.mxu0 %v365
        %987 = vmatpush1.msra.mxu0 %v364
        %988 = vmatprep.subr.mxu0 %v361
        %989 = vmatpush1.msra.mxu0 %v360
        %990 = vmatprep.subr.mxu0 %v357
        %991 = vmatpush1.msra.mxu0 %v356
        %992 = vmatprep.subr.mxu0 0.0
        %993 = vmatpush2.msra.mxu0 0.0
        %994 = vmatprep.subr.mxu0 0.0
        %995 = vmatpush2.msra.mxu0 0.0
        %996 = vmatprep.subr.mxu0 0.0
        %997 = vmatpush2.msra.mxu0 0.0
        %998 = vmatprep.subr.mxu0 0.0
        %999 = vmatpush2.msra.mxu0 0.0
        %1000 = vmatprep.subr.mxu0 0.0
        %1001 = vmatpush2.msra.mxu0 0.0
        %1002 = vmatprep.subr.mxu0 0.0
        %1003 = vmatpush2.msra.mxu0 0.0
        %1004 = vmatprep.subr.mxu0 0.0
        %1005 = vmatpush2.msra.mxu0 0.0
        %1006 = vmatprep.subr.mxu0 0.0
        %1007 = vmatpush2.msra.mxu0 0.0
        %1008 = vmatprep.subr.mxu0 0.0
        %1009 = vmatpush2.msra.mxu0 0.0
        %1010 = vmatprep.subr.mxu0 0.0
        %1011 = vmatpush2.msra.mxu0 0.0
        %1012 = vmatprep.subr.mxu0 0.0
        %1013 = vmatpush2.msra.mxu0 0.0
        %1014 = vmatprep.subr.mxu0 0.0
        %1015 = vmatpush2.msra.mxu0 0.0
        %1016 = vmatprep.subr.mxu0 %v433
        %1017 = vmatpush2.msra.mxu0 %v432
        %1018 = vmatprep.subr.mxu0 %v429
        %1019 = vmatpush2.msra.mxu0 %v428
        %1020 = vmatprep.subr.mxu0 %v425
        %1021 = vmatpush2.msra.mxu0 %v424
        %1022 = vmatprep.subr.mxu0 %v421
        %1023 = vmatpush2.msra.mxu0 %v420
        %1024 = vmatprep.mubr.f32.mxu0 %v863
        %1025 = vmatmul.mubr.f32.gmra.mxu0 %v843
        %v1026 = vpop.f32.mrf.mxu0
        %v1027 = vadd.f32 0.0, %v1026
        %v1028 = vpop.f32.mrf.mxu0
        %v1029 = vadd.f32 0.0, %v1028
        %1030 = vmatprep.mubr.f32.mxu0 %v865
        %1031 = vmatmul.mubr.f32.gmra.mxu0 %v848
        %v1032 = vpop.f32.mrf.mxu0
        %v1033 = vadd.f32 0.0, %v1032
        %v1034 = vpop.f32.mrf.mxu0
        %v1035 = vadd.f32 0.0, %v1034
        %1036 = vmatprep.mubr.f32.mxu0 %v867
        %1037 = vmatmul.mubr.f32.gmra.mxu0 %v852
        %v1038 = vpop.f32.mrf.mxu0
        %v1039 = vadd.f32 0.0, %v1038
        %v1040 = vpop.f32.mrf.mxu0
        %v1041 = vadd.f32 0.0, %v1040
        %1042 = vmatprep.mubr.f32.mxu0 %v869
        %1043 = vmatmul.mubr.f32.gmra.mxu0 %v856
        %v1044 = vpop.f32.mrf.mxu0
        %v1045 = vadd.f32 0.0, %v1044
        %v1046 = vpop.f32.mrf.mxu0
        %v1047 = vadd.f32 0.0, %v1046
        %1048 = vdwg.mxu0
        %v1049 = vadd.f32 %v729, %v938
        %v1050 = vadd.f32 %v731, %v940
        %v1051 = vadd.f32 %v818, %v1027
        %v1052 = vadd.f32 %v820, %v1029
        %v1053 = vadd.f32 %v735, %v944
        %v1054 = vadd.f32 %v737, %v946
        %v1055 = vadd.f32 %v824, %v1033
        %v1056 = vadd.f32 %v826, %v1035
        %v1057 = vadd.f32 %v741, %v950
        %v1058 = vadd.f32 %v743, %v952
        %v1059 = vadd.f32 %v830, %v1039
        %v1060 = vadd.f32 %v832, %v1041
        %v1061 = vadd.f32 %v747, %v956
        %v1062 = vadd.f32 %v749, %v958
        %v1063 = vadd.f32 %v836, %v1045
        %v1064 = vadd.f32 %v838, %v1047
        %v1065 = vmul.f32 %v1049, %v1049
        %v1066 = vmul.f32 %v1050, %v1050
        %v1067 = vmul.f32 %v1053, %v1053
        %v1068 = vmul.f32 %v1054, %v1054
        %v1069 = vmul.f32 %v1057, %v1057
        %v1070 = vmul.f32 %v1058, %v1058
        %v1071 = vmul.f32 %v1061, %v1061
        %v1072 = vmul.f32 %v1062, %v1062
        %v1073 = vmul.f32 %v1051, %v1051
        %v1074 = vmul.f32 %v1052, %v1052
        %v1075 = vmul.f32 %v1055, %v1055
        %v1076 = vmul.f32 %v1056, %v1056
        %v1077 = vmul.f32 %v1059, %v1059
        %v1078 = vmul.f32 %v1060, %v1060
        %v1079 = vmul.f32 %v1063, %v1063
        %v1080 = vmul.f32 %v1064, %v1064
        %v1081 = vadd.f32 %v1065, %v1073
        %v1082 = vadd.f32 %v1066, %v1074
        %v1083 = vadd.f32 %v1067, %v1075
        %v1084 = vadd.f32 %v1068, %v1076
        %v1085 = vadd.f32 %v1069, %v1077
        %v1086 = vadd.f32 %v1070, %v1078
        %v1087 = vadd.f32 %v1071, %v1079
        %v1088 = vadd.f32 %v1072, %v1080
        %v1089 = vld [vmem:[%s2] sm:$0xff]
        %v1090 = vld [vmem:[%s2 + $0x8] sm:$0xff]
        %v1091 = vld [vmem:[%s2 + $0x10] sm:$0xff]
        %v1092 = vld [vmem:[%s2 + $0x18] sm:$0xff]
        %v1093 = vld [vmem:[%s2 + $0x20] sm:$0xff]
        %v1094 = vld [vmem:[%s2 + $0x28] sm:$0xff]
        %v1095 = vld [vmem:[%s2 + $0x30] sm:$0xff]
        %v1096 = vld [vmem:[%s2 + $0x38] sm:$0xff]
        %v1097 = vld [vmem:[%s2 + $0x40] sm:$0xff]
        %v1098 = vld [vmem:[%s2 + $0x48] sm:$0xff]
        %v1099 = vld [vmem:[%s2 + $0x50] sm:$0xff]
        %v1100 = vld [vmem:[%s2 + $0x58] sm:$0xff]
        %v1101 = vld [vmem:[%s2 + $0x60] sm:$0xff]
        %v1102 = vld [vmem:[%s2 + $0x68] sm:$0xff]
        %v1103 = vld [vmem:[%s2 + $0x70] sm:$0xff]
        %v1104 = vld [vmem:[%s2 + $0x78] sm:$0xff]
        %v1105 = vld [vmem:[%s2 + $0x80] sm:$0xff]
        %v1106 = vld [vmem:[%s2 + $0x88] sm:$0xff]
        %v1107 = vld [vmem:[%s2 + $0x90] sm:$0xff]
        %v1108 = vld [vmem:[%s2 + $0x98] sm:$0xff]
        %v1109 = vld [vmem:[%s2 + $0xa0] sm:$0xff]
        %v1110 = vld [vmem:[%s2 + $0xa8] sm:$0xff]
        %v1111 = vld [vmem:[%s2 + $0xb0] sm:$0xff]
        %v1112 = vld [vmem:[%s2 + $0xb8] sm:$0xff]
        %v1113 = vld [vmem:[%s2 + $0xc0] sm:$0xff]
        %v1114 = vld [vmem:[%s2 + $0xc8] sm:$0xff]
        %v1115 = vld [vmem:[%s2 + $0xd0] sm:$0xff]
        %v1116 = vld [vmem:[%s2 + $0xd8] sm:$0xff]
        %v1117 = vld [vmem:[%s2 + $0xe0] sm:$0xff]
        %v1118 = vld [vmem:[%s2 + $0xe8] sm:$0xff]
        %v1119 = vld [vmem:[%s2 + $0xf0] sm:$0xff]
        %v1120 = vld [vmem:[%s2 + $0xf8] sm:$0xff]
        %1121 = vmatprep.subr.mxu0 0.0
        %1122 = vmatpush1.msra.mxu0 %v1104
        %1123 = vmatprep.subr.mxu0 0.0
        %1124 = vmatpush1.msra.mxu0 %v1103
        %1125 = vmatprep.subr.mxu0 0.0
        %1126 = vmatpush1.msra.mxu0 %v1102
        %1127 = vmatprep.subr.mxu0 0.0
        %1128 = vmatpush1.msra.mxu0 %v1101
        %1129 = vmatprep.subr.mxu0 0.0
        %1130 = vmatpush1.msra.mxu0 %v1100
        %1131 = vmatprep.subr.mxu0 0.0
        %1132 = vmatpush1.msra.mxu0 %v1099
        %1133 = vmatprep.subr.mxu0 0.0
        %1134 = vmatpush1.msra.mxu0 %v1098
        %1135 = vmatprep.subr.mxu0 0.0
        %1136 = vmatpush1.msra.mxu0 %v1097
        %1137 = vmatprep.subr.mxu0 0.0
        %1138 = vmatpush1.msra.mxu0 %v1096
        %1139 = vmatprep.subr.mxu0 0.0
        %1140 = vmatpush1.msra.mxu0 %v1095
        %1141 = vmatprep.subr.mxu0 0.0
        %1142 = vmatpush1.msra.mxu0 %v1094
        %1143 = vmatprep.subr.mxu0 0.0
        %1144 = vmatpush1.msra.mxu0 %v1093
        %1145 = vmatprep.subr.mxu0 0.0
        %1146 = vmatpush1.msra.mxu0 %v1092
        %1147 = vmatprep.subr.mxu0 0.0
        %1148 = vmatpush1.msra.mxu0 %v1091
        %1149 = vmatprep.subr.mxu0 0.0
        %1150 = vmatpush1.msra.mxu0 %v1090
        %1151 = vmatprep.subr.mxu0 0.0
        %1152 = vmatpush1.msra.mxu0 %v1089
        %1153 = vmatprep.subr.mxu0 0.0
        %1154 = vmatpush2.msra.mxu0 %v1120
        %1155 = vmatprep.subr.mxu0 0.0
        %1156 = vmatpush2.msra.mxu0 %v1119
        %1157 = vmatprep.subr.mxu0 0.0
        %1158 = vmatpush2.msra.mxu0 %v1118
        %1159 = vmatprep.subr.mxu0 0.0
        %1160 = vmatpush2.msra.mxu0 %v1117
        %1161 = vmatprep.subr.mxu0 0.0
        %1162 = vmatpush2.msra.mxu0 %v1116
        %1163 = vmatprep.subr.mxu0 0.0
        %1164 = vmatpush2.msra.mxu0 %v1115
        %1165 = vmatprep.subr.mxu0 0.0
        %1166 = vmatpush2.msra.mxu0 %v1114
        %1167 = vmatprep.subr.mxu0 0.0
        %1168 = vmatpush2.msra.mxu0 %v1113
        %1169 = vmatprep.subr.mxu0 0.0
        %1170 = vmatpush2.msra.mxu0 %v1112
        %1171 = vmatprep.subr.mxu0 0.0
        %1172 = vmatpush2.msra.mxu0 %v1111
        %1173 = vmatprep.subr.mxu0 0.0
        %1174 = vmatpush2.msra.mxu0 %v1110
        %1175 = vmatprep.subr.mxu0 0.0
        %1176 = vmatpush2.msra.mxu0 %v1109
        %1177 = vmatprep.subr.mxu0 0.0
        %1178 = vmatpush2.msra.mxu0 %v1108
        %1179 = vmatprep.subr.mxu0 0.0
        %1180 = vmatpush2.msra.mxu0 %v1107
        %1181 = vmatprep.subr.mxu0 0.0
        %1182 = vmatpush2.msra.mxu0 %v1106
        %1183 = vmatprep.subr.mxu0 0.0
        %1184 = vmatpush2.msra.mxu0 %v1105
        %1185 = vmatprep.mubr.f32.mxu0 %v1082
        %1186 = vmatmul.mubr.f32.gmra.mxu0 %v1081
        %v1187 = vpop.f32.mrf.mxu0
        %v1188 = vadd.f32 1.1920929e-07, %v1187
        %v1189 = vpop.f32.mrf.mxu0
        %1190 = vmatprep.mubr.f32.mxu0 %v1084
        %1191 = vmatmul.mubr.f32.gmra.mxu0 %v1083
        %v1192 = vpop.f32.mrf.mxu0
        %v1193 = vadd.f32 1.1920929e-07, %v1192
        %v1194 = vpop.f32.mrf.mxu0
        %1195 = vmatprep.mubr.f32.mxu0 %v1086
        %1196 = vmatmul.mubr.f32.gmra.mxu0 %v1085
        %v1197 = vpop.f32.mrf.mxu0
        %v1198 = vadd.f32 1.1920929e-07, %v1197
        %v1199 = vpop.f32.mrf.mxu0
        %1200 = vmatprep.mubr.f32.mxu0 %v1088
        %1201 = vmatmul.mubr.f32.gmra.mxu0 %v1087
        %v1202 = vpop.f32.mrf.mxu0
        %v1203 = vadd.f32 1.1920929e-07, %v1202
        %v1204 = vpop.f32.mrf.mxu0
        %1205 = vdwg.mxu0
        %v1206 = vlog2.pop %v1188
        %v1207 = vmul.f32 %v1206, 0.6931472
        %v1208 = vlog2.pop %v1193
        %v1209 = vmul.f32 %v1208, 0.6931472
        %v1210 = vlog2.pop %v1198
        %v1211 = vmul.f32 %v1210, 0.6931472
        %v1212 = vlog2.pop %v1203
        %v1213 = vmul.f32 %v1212, 0.6931472
        %v1214 = vsub.f32 %v1207, -7.056
        %v1215 = vsub.f32 %v1209, -7.056
        %v1216 = vsub.f32 %v1211, -7.056
        %v1217 = vsub.f32 %v1213, -7.056
        %v1218 = vmul.f32 %v1214, 0.23849273
        %v1219 = vmul.f32 %v1215, 0.23849273
        %v1220 = vmul.f32 %v1216, 0.23849273
        %v1221 = vmul.f32 %v1217, 0.23849273
        %1222 = vxpose.xlu0.b32.start [1/16] %v1218, 128
        %1223 = vxpose.xlu0.b32.cont [2/16] %v1219, 128
        %1224 = vxpose.xlu0.b32.cont [3/16] %v1220, 128
        %1225 = vxpose.xlu0.b32.cont [4/16] %v1221, 128
        %1226 = vxpose.xlu0.b32.cont [5/16] 0.0, 128
        %1227 = vxpose.xlu0.b32.cont [6/16] 0.0, 128
        %1228 = vxpose.xlu0.b32.cont [7/16] 0.0, 128
        %1229 = vxpose.xlu0.b32.cont [8/16] 0.0, 128
        %1230 = vxpose.xlu0.b32.cont [9/16] 0.0, 128
        %1231 = vxpose.xlu0.b32.cont [10/16] 0.0, 128
        %1232 = vxpose.xlu0.b32.cont [11/16] 0.0, 128
        %1233 = vxpose.xlu0.b32.cont [12/16] 0.0, 128
        %1234 = vxpose.xlu0.b32.cont [13/16] 0.0, 128
        %1235 = vxpose.xlu0.b32.cont [14/16] 0.0, 128
        %1236 = vxpose.xlu0.b32.cont [15/16] 0.0, 128
        %1237 = vxpose.xlu0.b32.end [16/16] 0.0, 128
        %v1238 = vpop.trf.xlu0
        %v1239 = vpop.trf.xlu0
        %v1240 = vpop.trf.xlu0
        %v1241 = vpop.trf.xlu0
        %v1242 = vpop.trf.xlu0
        %v1243 = vpop.trf.xlu0
        %v1244 = vpop.trf.xlu0
        %v1245 = vpop.trf.xlu0
        %v1246 = vpop.trf.xlu0
        %v1247 = vpop.trf.xlu0
        %v1248 = vpop.trf.xlu0
        %v1249 = vpop.trf.xlu0
        %v1250 = vpop.trf.xlu0
        %v1251 = vpop.trf.xlu0
        %v1252 = vpop.trf.xlu0
        %v1253 = vpop.trf.xlu0
        %1254 = vst.msk [vmem:[%s178] sm:$0xff] %vm467, %v1238
        %1255 = vst.msk [vmem:[%s178 + $0x8] sm:$0xff] %vm467, %v1239
        %s1256 = sand.u32 %s94, 1
        %s1257 = scalar_lea.sflag [#allocation4], %s1256
        %s1258 = sand.u32 %s94, 1
        %s1259 = smul.addr %s1258, 16
        %s1260 = scalar_lea.vmem [#allocation5], %s1259
        // Predicated region
        $region37: #{tpu_custom_call.1} parent=31 // pred_check
          %p1261 = pneg %p104
        $region38: #{tpu_custom_call.1} parent=31 // pred_check_branch
          %1263 = sbr.rel (%p1261) target = $region40
        $region39: #{tpu_custom_call.1} parent=31 // pred_region
          %s1265 = ssub.s32 256, 256
          %1266 = vsyncadd %s1257, %s1265
          %s1267 = smul.addr %s18, 2
          %s1268 = smul.addr %s1267, 128
          %s1269 = scalar_lea.hbm %s3, %s1268
          %s1270 = sshll.u32 %s1260, 4
          %s1271 = int_to_ptr.vmem [resolvable:$true] %s1270
          %1276 = dma.vmem_to_hbm [thread:$0]  %s1271, 256, %s1269, %s1257, 128, 128, 8
        $region40: #{tpu_custom_call.1} parent=31 // pred_fallthru
          _
      $region32: #{tpu_custom_call.1} parent=5 // pred_fallthru
        _
      %p1277 = scmp.le.s32.totalorder 2, %s13
      // Predicated region
      $region41: #{tpu_custom_call.1} parent=5 // pred_check
        %p1278 = pneg %p1277
      $region42: #{tpu_custom_call.1} parent=5 // pred_check_branch
        %1280 = sbr.rel (%p1278) target = $region44
      $region43: #{tpu_custom_call.1} parent=5 // pred_region
        %s1281 = ssub.s32 %s13, 2
        // Predicated region
        $region45: #{tpu_custom_call.1} parent=43 // pred_check
          %p1282 = pneg %p110
        $region46: #{tpu_custom_call.1} parent=43 // pred_check_branch
          %1284 = sbr.rel (%p1282) target = $region48
        $region47: #{tpu_custom_call.1} parent=43 // pred_region
          %s1285 = sand.u32 %s95, 1
          %s1286 = scalar_lea.sflag [#allocation4], %s1285
          %s1287 = sand.u32 %s95, 1
          %s1288 = smul.addr %s1287, 16
          %s1289 = scalar_lea.vmem [#allocation5], %s1288
          %1290 = dma.done %s1286, 256
        $region48: #{tpu_custom_call.1} parent=43 // pred_fallthru
          _
      $region44: #{tpu_custom_call.1} parent=5 // pred_fallthru
        _
    $region6: #{tpu_custom_call.1} parent=1 // loop_footer
      %s17 = sadd.s32 1, %s13
    $region7: #{tpu_custom_call.1} parent=1 // loop_footer_branch
      %12 = sbr.rel target = $region3
    $region8: #{tpu_custom_call.1} parent=1 // loop_exit
      _
    %1291 = vsyncpa [#allocation3], 1
    %s1292 = scalar_lea.sflag [#allocation3], 1
    %1293 = vsyncpa %s1292, 1
    %1294 = vsyncpa [#allocation4], 1
    %s1295 = scalar_lea.sflag [#allocation4], 1
    %1296 = vsyncpa %s1295, 1

</llo_original>
